<compile_context>
chip_gen: v7x
topology: tpu7x:2x2x1
jax: 0.10.0
libtpu: 0.0.40
codegen_flags: <defaults>
</compile_context>

<pallas_src>
import jax
import jax.numpy as jnp
from jax.experimental import pallas as pl
from jax.experimental.pallas import tpu as pltpu

# ----- static configuration (small, consistent with the module) -----
B = 2                      # batch
N = 8                      # num tokens (num_patches)
D = 32                     # embed dim
NUM_HEADS = 4
HEAD_DIM = D // NUM_HEADS
SCALE = HEAD_DIM ** (-0.5)          # qk_scale default
MLP_HIDDEN = int(D * 4.0)           # mlp_ratio = 4.0
LN_EPS = 1e-5
BN = B * N                          # fused batch*token rows


def _layernorm(x, gamma, beta):
    mu = jnp.mean(x, axis=-1, keepdims=True)
    var = jnp.mean((x - mu) ** 2, axis=-1, keepdims=True)
    return (x - mu) * jax.lax.rsqrt(var + LN_EPS) * gamma + beta


def block_kernel(x_ref, mask_ref,
                 ln1g_ref, ln1b_ref,
                 wqkv_t_ref,                      # (D, 3D) bf16, head-major, scale folded into Q cols
                 wproj_t_ref, bproj_ref,          # (D, D) bf16, (1, D) f32
                 ln2g_ref, ln2b_ref,
                 w1t_ref, b1_ref,                 # (D, MLP_HIDDEN) bf16, (1, MLP_HIDDEN) f32
                 w2t_ref, b2_ref,                 # (MLP_HIDDEN, D) bf16, (1, D) f32
                 o_ref):
    x = x_ref[...]                                            # (BN, D) f32

    # ---- norm1 + attention ----
    xn = _layernorm(x, ln1g_ref[...], ln1b_ref[...])          # (BN, D) f32

    # one fused QKV matmul (bf16 operands, f32 accumulation == autocast region)
    qkv = jnp.dot(xn.astype(jnp.bfloat16), wqkv_t_ref[...],
                  preferred_element_type=jnp.float32)         # (BN, 3D) f32

    # per-head scores (attention core stays f32, like torch autocast(False))
    scores = []
    v_heads = []
    for h in range(NUM_HEADS):
        q_h = qkv[:, h * HEAD_DIM:(h + 1) * HEAD_DIM]                 # (BN, Dh)
        k_h = qkv[:, D + h * HEAD_DIM: D + (h + 1) * HEAD_DIM]        # (BN, Dh)
        v_h = qkv[:, 2 * D + h * HEAD_DIM: 2 * D + (h + 1) * HEAD_DIM]
        # q @ k^T without an explicit transpose (contract the Dh dims)
        s_h = jax.lax.dot_general(q_h, k_h, (((1,), (1,)), ((), ())),
                                  preferred_element_type=jnp.float32)  # (BN, BN)
        scores.append(s_h)
        v_heads.append(v_h)

    # one stacked softmax over all heads; cross-batch entries masked with a
    # single precomputed additive bias (0 / -1e30)
    s_big = jnp.concatenate(scores, axis=0) + mask_ref[...]   # (H*BN, BN)
    m = jnp.max(s_big, axis=-1, keepdims=True)
    p = jnp.exp(s_big - m)
    denom = jnp.sum(p, axis=-1, keepdims=True)
    p = p * pl.reciprocal(denom, approx=True)

    # per-head attention outputs, lane-concatenated -> one projection matmul
    o_heads = []
    for h in range(NUM_HEADS):
        p_h = p[h * BN:(h + 1) * BN, :]                       # static sublane slice
        o_heads.append(jnp.dot(p_h, v_heads[h],
                               preferred_element_type=jnp.float32))    # (BN, Dh)
    o_all = jnp.concatenate(o_heads, axis=-1)                 # (BN, D) f32 (one vreg wide)

    proj = jnp.dot(o_all.astype(jnp.bfloat16), wproj_t_ref[...],
                   preferred_element_type=jnp.float32) + bproj_ref[...]
    x1 = x + proj                                             # residual 1

    # ---- norm2 + MLP (autocast region: bf16 matmul operands, f32 accum) ----
    xn2 = _layernorm(x1, ln2g_ref[...], ln2b_ref[...])
    h1 = jnp.dot(xn2.astype(jnp.bfloat16), w1t_ref[...],
                 preferred_element_type=jnp.float32) + b1_ref[...]
    h1 = jnp.clip(h1, 0.0, 6.0)                               # ReLU6
    y = jnp.dot(h1.astype(jnp.bfloat16), w2t_ref[...],
                preferred_element_type=jnp.float32) + b2_ref[...]

    o_ref[...] = x1 + y                                       # residual 2 (one wide store)


def _full_spec(shape):
    zeros = tuple(0 for _ in shape)
    return pl.BlockSpec(shape, lambda *_: zeros)


def prepare_params(params):
    """One-time weight re-layout (outside the per-call hot path)."""
    (ln1g, ln1b, wqkv, wproj, bproj, ln2g, ln2b, w1, b1, w2, b2) = params

    # torch qkv.weight rows are ordered [s, h, d]; transposing gives a
    # (D_in, 3D_out) slab whose output columns are already head-major within
    # each q/k/v section.  Fold the softmax scale into the Q columns, cast bf16.
    wqkv_t = wqkv.T
    wqkv_t = jnp.concatenate([wqkv_t[:, :D] * SCALE, wqkv_t[:, D:]],
                             axis=1).astype(jnp.bfloat16)          # (D, 3D)
    wproj_t = wproj.T.astype(jnp.bfloat16)                          # (D, D)
    w1_t = w1.T.astype(jnp.bfloat16)                                # (D, MLP_HIDDEN)
    w2_t = w2.T.astype(jnp.bfloat16)                                # (MLP_HIDDEN, D)

    # additive cross-batch mask for the stacked (H*BN, BN) score matrix
    ri = jnp.arange(BN)[:, None] // N
    ci = jnp.arange(BN)[None, :] // N
    mask = jnp.where(ri == ci, 0.0, -1e30).astype(jnp.float32)      # (BN, BN)
    mask = jnp.tile(mask, (NUM_HEADS, 1))                           # (H*BN, BN)

    return (mask, ln1g, ln1b, wqkv_t, wproj_t, bproj,
            ln2g, ln2b, w1_t, b1, w2_t, b2)


@jax.jit
def vit_block(x, prepped):
    (mask, ln1g, ln1b, wqkv_t, wproj_t, bproj,
     ln2g, ln2b, w1_t, b1, w2_t, b2) = prepped

    x2 = x.reshape(BN, D)                                     # fuse batch * tokens

    in_specs = [
        _full_spec((BN, D)),                                  # x
        _full_spec((NUM_HEADS * BN, BN)),                     # additive batch mask
        _full_spec((1, D)), _full_spec((1, D)),               # ln1 gamma/beta
        _full_spec((D, 3 * D)),                               # fused QKV weight (bf16)
        _full_spec((D, D)),                                   # Wproj^T (bf16)
        _full_spec((1, D)),                                   # proj bias
        _full_spec((1, D)), _full_spec((1, D)),               # ln2 gamma/beta
        _full_spec((D, MLP_HIDDEN)), _full_spec((1, MLP_HIDDEN)),   # fc1
        _full_spec((MLP_HIDDEN, D)), _full_spec((1, D)),      # fc2
    ]

    out = pl.pallas_call(
        block_kernel,
        out_shape=jax.ShapeDtypeStruct((BN, D), jnp.float32),
        grid_spec=pltpu.PrefetchScalarGridSpec(
            num_scalar_prefetch=0,
            grid=(1,),                                        # single step: no grid overhead
            in_specs=in_specs,
            out_specs=_full_spec((BN, D)),
        ),
        compiler_params=pltpu.CompilerParams(
            dimension_semantics=("arbitrary",)),
    )(x2, mask, ln1g, ln1b, wqkv_t, wproj_t, bproj,
      ln2g, ln2b, w1_t, b1, w2_t, b2)
    return out.reshape(B, N, D)


def make_params(key):
    ks = jax.random.split(key, 8)
    std = 0.02
    ln1g = jnp.ones((1, D), jnp.float32)
    ln1b = jnp.zeros((1, D), jnp.float32)
    ln2g = jnp.ones((1, D), jnp.float32)
    ln2b = jnp.zeros((1, D), jnp.float32)
    wqkv = std * jax.random.normal(ks[0], (3 * D, D), jnp.float32)   # qkv_bias=False
    wproj = std * jax.random.normal(ks[1], (D, D), jnp.float32)
    bproj = std * jax.random.normal(ks[2], (1, D), jnp.float32)
    w1 = std * jax.random.normal(ks[3], (MLP_HIDDEN, D), jnp.float32)
    b1 = std * jax.random.normal(ks[4], (1, MLP_HIDDEN), jnp.float32)
    w2 = std * jax.random.normal(ks[5], (D, MLP_HIDDEN), jnp.float32)
    b2 = std * jax.random.normal(ks[6], (1, D), jnp.float32)
    return (ln1g, ln1b, wqkv, wproj, bproj, ln2g, ln2b, w1, b1, w2, b2)


def reference_block(x, params):
    """Pure-JAX f32 reference mirroring the torch forward (eval mode, drop=0)."""
    (ln1g, ln1b, wqkv, wproj, bproj, ln2g, ln2b, w1, b1, w2, b2) = params

    def ln(v, g, bta):
        mu = jnp.mean(v, -1, keepdims=True)
        var = jnp.mean((v - mu) ** 2, -1, keepdims=True)
        return (v - mu) / jnp.sqrt(var + LN_EPS) * g + bta

    xn = ln(x, ln1g[0], ln1b[0])
    qkv = xn @ wqkv.T                                                    # (B,N,3D)
    qkv = qkv.reshape(B, N, 3, NUM_HEADS, HEAD_DIM).transpose(2, 0, 3, 1, 4)
    q, k, v = qkv[0], qkv[1], qkv[2]                                     # (B,H,N,Dh)
    attn = jnp.einsum('bhnd,bhmd->bhnm', q, k) * SCALE
    attn = jax.nn.softmax(attn, axis=-1)
    o = jnp.einsum('bhnm,bhmd->bhnd', attn, v).transpose(0, 2, 1, 3).reshape(B, N, D)
    x1 = x + (o @ wproj.T + bproj[0])
    xn2 = ln(x1, ln2g[0], ln2b[0])
    h = jnp.clip(xn2 @ w1.T + b1[0], 0.0, 6.0)
    return x1 + (h @ w2.T + b2[0])


if __name__ == "__main__":
    key = jax.random.PRNGKey(0)
    kx, kp = jax.random.split(key)
    x = jax.random.normal(kx, (B, N, D), jnp.float32)
    params = make_params(kp)
    prepped = prepare_params(params)          # one-time re-layout, outside hot path

    out = vit_block(x, prepped)
    out = jax.block_until_ready(out)

    ref = reference_block(x, params)
    assert out.shape == (B, N, D)
    # Tolerance covers the bf16 autocast-region matmuls and the approximate
    # (EUP) softmax reciprocal vs. the pure-f32 reference.
    err = jnp.max(jnp.abs(out - ref))
    assert jnp.allclose(out, ref, atol=5e-3, rtol=5e-3), f"max abs err = {err}"
    print("KERNEL_OK")
</pallas_src>

<mosaic_0001>
module attributes {stable_mosaic.version = 11 : i64} {
  func.func @block_kernel(%arg0: i32, %arg1: memref<16x32xf32, #tpu.memory_space<vmem>>, %arg2: memref<64x16xf32, #tpu.memory_space<vmem>>, %arg3: memref<1x32xf32, #tpu.memory_space<vmem>>, %arg4: memref<1x32xf32, #tpu.memory_space<vmem>>, %arg5: memref<32x96xbf16, #tpu.memory_space<vmem>>, %arg6: memref<32x32xbf16, #tpu.memory_space<vmem>>, %arg7: memref<1x32xf32, #tpu.memory_space<vmem>>, %arg8: memref<1x32xf32, #tpu.memory_space<vmem>>, %arg9: memref<1x32xf32, #tpu.memory_space<vmem>>, %arg10: memref<32x128xbf16, #tpu.memory_space<vmem>>, %arg11: memref<1x128xf32, #tpu.memory_space<vmem>>, %arg12: memref<128x32xbf16, #tpu.memory_space<vmem>>, %arg13: memref<1x32xf32, #tpu.memory_space<vmem>>, %arg14: memref<16x32xf32, #tpu.memory_space<vmem>>) attributes {dimension_semantics = [#tpu.dimension_semantics<arbitrary>], iteration_bounds = array<i64: 1>, scalar_prefetch = 0 : i64, scratch_operands = 0 : i64, tpu.core_type = #tpu.core_type<tc>, window_params = [{pipeline_mode = #tpu.pipeline_mode<synchronous>, transform_indices = @transform_0, window_bounds = array<i64: 16, 32>}, {pipeline_mode = #tpu.pipeline_mode<synchronous>, transform_indices = @transform_1, window_bounds = array<i64: 64, 16>}, {pipeline_mode = #tpu.pipeline_mode<synchronous>, transform_indices = @transform_2, window_bounds = array<i64: 1, 32>}, {pipeline_mode = #tpu.pipeline_mode<synchronous>, transform_indices = @transform_3, window_bounds = array<i64: 1, 32>}, {pipeline_mode = #tpu.pipeline_mode<synchronous>, transform_indices = @transform_4, window_bounds = array<i64: 32, 96>}, {pipeline_mode = #tpu.pipeline_mode<synchronous>, transform_indices = @transform_5, window_bounds = array<i64: 32, 32>}, {pipeline_mode = #tpu.pipeline_mode<synchronous>, transform_indices = @transform_6, window_bounds = array<i64: 1, 32>}, {pipeline_mode = #tpu.pipeline_mode<synchronous>, transform_indices = @transform_7, window_bounds = array<i64: 1, 32>}, {pipeline_mode = #tpu.pipeline_mode<synchronous>, transform_indices = @transform_8, window_bounds = array<i64: 1, 32>}, {pipeline_mode = #tpu.pipeline_mode<synchronous>, transform_indices = @transform_9, window_bounds = array<i64: 32, 128>}, {pipeline_mode = #tpu.pipeline_mode<synchronous>, transform_indices = @transform_10, window_bounds = array<i64: 1, 128>}, {pipeline_mode = #tpu.pipeline_mode<synchronous>, transform_indices = @transform_11, window_bounds = array<i64: 128, 32>}, {pipeline_mode = #tpu.pipeline_mode<synchronous>, transform_indices = @transform_12, window_bounds = array<i64: 1, 32>}, {pipeline_mode = #tpu.pipeline_mode<synchronous>, transform_indices = @transform_13, window_bounds = array<i64: 16, 32>}]} {
    %c0 = arith.constant 0 : index
    %c0_0 = arith.constant 0 : index
    %0 = vector.load %arg1[%c0, %c0_0] : memref<16x32xf32, #tpu.memory_space<vmem>>, vector<16x32xf32>
    %c0_1 = arith.constant 0 : index
    %c0_2 = arith.constant 0 : index
    %1 = vector.load %arg3[%c0_1, %c0_2] : memref<1x32xf32, #tpu.memory_space<vmem>>, vector<1x32xf32>
    %c0_3 = arith.constant 0 : index
    %c0_4 = arith.constant 0 : index
    %2 = vector.load %arg4[%c0_3, %c0_4] : memref<1x32xf32, #tpu.memory_space<vmem>>, vector<1x32xf32>
    %cst = arith.constant dense<0.000000e+00> : vector<16xf32>
    %3 = vector.multi_reduction <add>, %0, %cst [1] : vector<16x32xf32> to vector<16xf32>
    %4 = vector.shape_cast %3 : vector<16xf32> to vector<16x1xf32>
    %cst_5 = arith.constant 3.200000e+01 : f32
    %5 = vector.broadcast %cst_5 : f32 to vector<16x1xf32>
    %6 = arith.divf %4, %5 : vector<16x1xf32>
    %7 = vector.broadcast %6 : vector<16x1xf32> to vector<16x32xf32>
    %8 = arith.subf %0, %7 : vector<16x32xf32>
    %9 = arith.mulf %8, %8 : vector<16x32xf32>
    %cst_6 = arith.constant dense<0.000000e+00> : vector<16xf32>
    %10 = vector.multi_reduction <add>, %9, %cst_6 [1] : vector<16x32xf32> to vector<16xf32>
    %11 = vector.shape_cast %10 : vector<16xf32> to vector<16x1xf32>
    %cst_7 = arith.constant 3.200000e+01 : f32
    %12 = vector.broadcast %cst_7 : f32 to vector<16x1xf32>
    %13 = arith.divf %11, %12 : vector<16x1xf32>
    %14 = vector.broadcast %6 : vector<16x1xf32> to vector<16x32xf32>
    %15 = arith.subf %0, %14 : vector<16x32xf32>
    %cst_8 = arith.constant 9.99999974E-6 : f32
    %16 = vector.broadcast %cst_8 : f32 to vector<16x1xf32>
    %17 = arith.addf %13, %16 : vector<16x1xf32>
    %18 = math.rsqrt %17 : vector<16x1xf32>
    %19 = vector.broadcast %18 : vector<16x1xf32> to vector<16x32xf32>
    %20 = arith.mulf %15, %19 : vector<16x32xf32>
    %21 = vector.broadcast %1 : vector<1x32xf32> to vector<16x32xf32>
    %22 = arith.mulf %20, %21 : vector<16x32xf32>
    %23 = vector.broadcast %2 : vector<1x32xf32> to vector<16x32xf32>
    %24 = arith.addf %22, %23 : vector<16x32xf32>
    %25 = arith.truncf %24 : vector<16x32xf32> to vector<16x32xbf16>
    %c0_9 = arith.constant 0 : index
    %c0_10 = arith.constant 0 : index
    %26 = vector.load %arg5[%c0_9, %c0_10] : memref<32x96xbf16, #tpu.memory_space<vmem>>, vector<32x96xbf16>
    %cst_11 = arith.constant dense<0.000000e+00> : vector<16x96xf32>
    %27 = tpu.matmul %25, %26, %cst_11 {dimension_numbers = #tpu.dot_dimension_numbers<[1], [0], [0], [1], [0, 0, 1, 1], [], []>} : vector<16x32xbf16>, vector<32x96xbf16>, vector<16x96xf32> -> vector<16x96xf32>
    %28 = vector.extract_strided_slice %27 {offsets = [0, 0], sizes = [16, 8], strides = [1, 1]} : vector<16x96xf32> to vector<16x8xf32>
    %29 = vector.extract_strided_slice %27 {offsets = [0, 32], sizes = [16, 8], strides = [1, 1]} : vector<16x96xf32> to vector<16x8xf32>
    %30 = vector.extract_strided_slice %27 {offsets = [0, 64], sizes = [16, 8], strides = [1, 1]} : vector<16x96xf32> to vector<16x8xf32>
    %cst_12 = arith.constant dense<0.000000e+00> : vector<16x16xf32>
    %31 = tpu.matmul %28, %29, %cst_12 {dimension_numbers = #tpu.dot_dimension_numbers<[1], [1], [0], [0], [0, 0, 1, 0], [], []>} : vector<16x8xf32>, vector<16x8xf32>, vector<16x16xf32> -> vector<16x16xf32>
    %32 = vector.extract_strided_slice %27 {offsets = [0, 8], sizes = [16, 8], strides = [1, 1]} : vector<16x96xf32> to vector<16x8xf32>
    %33 = vector.extract_strided_slice %27 {offsets = [0, 40], sizes = [16, 8], strides = [1, 1]} : vector<16x96xf32> to vector<16x8xf32>
    %34 = vector.extract_strided_slice %27 {offsets = [0, 72], sizes = [16, 8], strides = [1, 1]} : vector<16x96xf32> to vector<16x8xf32>
    %cst_13 = arith.constant dense<0.000000e+00> : vector<16x16xf32>
    %35 = tpu.matmul %32, %33, %cst_13 {dimension_numbers = #tpu.dot_dimension_numbers<[1], [1], [0], [0], [0, 0, 1, 0], [], []>} : vector<16x8xf32>, vector<16x8xf32>, vector<16x16xf32> -> vector<16x16xf32>
    %36 = vector.extract_strided_slice %27 {offsets = [0, 16], sizes = [16, 8], strides = [1, 1]} : vector<16x96xf32> to vector<16x8xf32>
    %37 = vector.extract_strided_slice %27 {offsets = [0, 48], sizes = [16, 8], strides = [1, 1]} : vector<16x96xf32> to vector<16x8xf32>
    %38 = vector.extract_strided_slice %27 {offsets = [0, 80], sizes = [16, 8], strides = [1, 1]} : vector<16x96xf32> to vector<16x8xf32>
    %cst_14 = arith.constant dense<0.000000e+00> : vector<16x16xf32>
    %39 = tpu.matmul %36, %37, %cst_14 {dimension_numbers = #tpu.dot_dimension_numbers<[1], [1], [0], [0], [0, 0, 1, 0], [], []>} : vector<16x8xf32>, vector<16x8xf32>, vector<16x16xf32> -> vector<16x16xf32>
    %40 = vector.extract_strided_slice %27 {offsets = [0, 24], sizes = [16, 8], strides = [1, 1]} : vector<16x96xf32> to vector<16x8xf32>
    %41 = vector.extract_strided_slice %27 {offsets = [0, 56], sizes = [16, 8], strides = [1, 1]} : vector<16x96xf32> to vector<16x8xf32>
    %42 = vector.extract_strided_slice %27 {offsets = [0, 88], sizes = [16, 8], strides = [1, 1]} : vector<16x96xf32> to vector<16x8xf32>
    %cst_15 = arith.constant dense<0.000000e+00> : vector<16x16xf32>
    %43 = tpu.matmul %40, %41, %cst_15 {dimension_numbers = #tpu.dot_dimension_numbers<[1], [1], [0], [0], [0, 0, 1, 0], [], []>} : vector<16x8xf32>, vector<16x8xf32>, vector<16x16xf32> -> vector<16x16xf32>
    %44 = tpu.concatenate %31, %35, %39, %43 in 0 : vector<16x16xf32>, vector<16x16xf32>, vector<16x16xf32>, vector<16x16xf32> -> vector<64x16xf32>
    %c0_16 = arith.constant 0 : index
    %c0_17 = arith.constant 0 : index
    %45 = vector.load %arg2[%c0_16, %c0_17] : memref<64x16xf32, #tpu.memory_space<vmem>>, vector<64x16xf32>
    %46 = arith.addf %44, %45 : vector<64x16xf32>
    %cst_18 = arith.constant dense<0xFF800000> : vector<64xf32>
    %47 = vector.multi_reduction <maximumf>, %46, %cst_18 [1] : vector<64x16xf32> to vector<64xf32>
    %48 = vector.shape_cast %47 : vector<64xf32> to vector<64x1xf32>
    %49 = vector.broadcast %48 : vector<64x1xf32> to vector<64x16xf32>
    %50 = arith.subf %46, %49 : vector<64x16xf32>
    %51 = math.exp %50 : vector<64x16xf32>
    %cst_19 = arith.constant dense<0.000000e+00> : vector<64xf32>
    %52 = vector.multi_reduction <add>, %51, %cst_19 [1] : vector<64x16xf32> to vector<64xf32>
    %53 = vector.shape_cast %52 : vector<64xf32> to vector<64x1xf32>
    %54 = tpu.reciprocal %53 {approx = true} : vector<64x1xf32> -> vector<64x1xf32>
    %55 = vector.broadcast %54 : vector<64x1xf32> to vector<64x16xf32>
    %56 = arith.mulf %51, %55 : vector<64x16xf32>
    %57 = vector.extract_strided_slice %56 {offsets = [0, 0], sizes = [16, 16], strides = [1, 1]} : vector<64x16xf32> to vector<16x16xf32>
    %cst_20 = arith.constant dense<0.000000e+00> : vector<16x8xf32>
    %58 = tpu.matmul %57, %30, %cst_20 {dimension_numbers = #tpu.dot_dimension_numbers<[1], [0], [0], [1], [0, 0, 1, 1], [], []>} : vector<16x16xf32>, vector<16x8xf32>, vector<16x8xf32> -> vector<16x8xf32>
    %59 = vector.extract_strided_slice %56 {offsets = [16, 0], sizes = [16, 16], strides = [1, 1]} : vector<64x16xf32> to vector<16x16xf32>
    %cst_21 = arith.constant dense<0.000000e+00> : vector<16x8xf32>
    %60 = tpu.matmul %59, %34, %cst_21 {dimension_numbers = #tpu.dot_dimension_numbers<[1], [0], [0], [1], [0, 0, 1, 1], [], []>} : vector<16x16xf32>, vector<16x8xf32>, vector<16x8xf32> -> vector<16x8xf32>
    %61 = vector.extract_strided_slice %56 {offsets = [32, 0], sizes = [16, 16], strides = [1, 1]} : vector<64x16xf32> to vector<16x16xf32>
    %cst_22 = arith.constant dense<0.000000e+00> : vector<16x8xf32>
    %62 = tpu.matmul %61, %38, %cst_22 {dimension_numbers = #tpu.dot_dimension_numbers<[1], [0], [0], [1], [0, 0, 1, 1], [], []>} : vector<16x16xf32>, vector<16x8xf32>, vector<16x8xf32> -> vector<16x8xf32>
    %63 = vector.extract_strided_slice %56 {offsets = [48, 0], sizes = [16, 16], strides = [1, 1]} : vector<64x16xf32> to vector<16x16xf32>
    %cst_23 = arith.constant dense<0.000000e+00> : vector<16x8xf32>
    %64 = tpu.matmul %63, %42, %cst_23 {dimension_numbers = #tpu.dot_dimension_numbers<[1], [0], [0], [1], [0, 0, 1, 1], [], []>} : vector<16x16xf32>, vector<16x8xf32>, vector<16x8xf32> -> vector<16x8xf32>
    %65 = tpu.concatenate %58, %60, %62, %64 in 1 : vector<16x8xf32>, vector<16x8xf32>, vector<16x8xf32>, vector<16x8xf32> -> vector<16x32xf32>
    %66 = arith.truncf %65 : vector<16x32xf32> to vector<16x32xbf16>
    %c0_24 = arith.constant 0 : index
    %c0_25 = arith.constant 0 : index
    %67 = vector.load %arg6[%c0_24, %c0_25] : memref<32x32xbf16, #tpu.memory_space<vmem>>, vector<32x32xbf16>
    %cst_26 = arith.constant dense<0.000000e+00> : vector<16x32xf32>
    %68 = tpu.matmul %66, %67, %cst_26 {dimension_numbers = #tpu.dot_dimension_numbers<[1], [0], [0], [1], [0, 0, 1, 1], [], []>} : vector<16x32xbf16>, vector<32x32xbf16>, vector<16x32xf32> -> vector<16x32xf32>
    %c0_27 = arith.constant 0 : index
    %c0_28 = arith.constant 0 : index
    %69 = vector.load %arg7[%c0_27, %c0_28] : memref<1x32xf32, #tpu.memory_space<vmem>>, vector<1x32xf32>
    %70 = vector.broadcast %69 : vector<1x32xf32> to vector<16x32xf32>
    %71 = arith.addf %68, %70 : vector<16x32xf32>
    %72 = arith.addf %0, %71 : vector<16x32xf32>
    %c0_29 = arith.constant 0 : index
    %c0_30 = arith.constant 0 : index
    %73 = vector.load %arg8[%c0_29, %c0_30] : memref<1x32xf32, #tpu.memory_space<vmem>>, vector<1x32xf32>
    %c0_31 = arith.constant 0 : index
    %c0_32 = arith.constant 0 : index
    %74 = vector.load %arg9[%c0_31, %c0_32] : memref<1x32xf32, #tpu.memory_space<vmem>>, vector<1x32xf32>
    %cst_33 = arith.constant dense<0.000000e+00> : vector<16xf32>
    %75 = vector.multi_reduction <add>, %72, %cst_33 [1] : vector<16x32xf32> to vector<16xf32>
    %76 = vector.shape_cast %75 : vector<16xf32> to vector<16x1xf32>
    %cst_34 = arith.constant 3.200000e+01 : f32
    %77 = vector.broadcast %cst_34 : f32 to vector<16x1xf32>
    %78 = arith.divf %76, %77 : vector<16x1xf32>
    %79 = vector.broadcast %78 : vector<16x1xf32> to vector<16x32xf32>
    %80 = arith.subf %72, %79 : vector<16x32xf32>
    %81 = arith.mulf %80, %80 : vector<16x32xf32>
    %cst_35 = arith.constant dense<0.000000e+00> : vector<16xf32>
    %82 = vector.multi_reduction <add>, %81, %cst_35 [1] : vector<16x32xf32> to vector<16xf32>
    %83 = vector.shape_cast %82 : vector<16xf32> to vector<16x1xf32>
    %cst_36 = arith.constant 3.200000e+01 : f32
    %84 = vector.broadcast %cst_36 : f32 to vector<16x1xf32>
    %85 = arith.divf %83, %84 : vector<16x1xf32>
    %86 = vector.broadcast %78 : vector<16x1xf32> to vector<16x32xf32>
    %87 = arith.subf %72, %86 : vector<16x32xf32>
    %cst_37 = arith.constant 9.99999974E-6 : f32
    %88 = vector.broadcast %cst_37 : f32 to vector<16x1xf32>
    %89 = arith.addf %85, %88 : vector<16x1xf32>
    %90 = math.rsqrt %89 : vector<16x1xf32>
    %91 = vector.broadcast %90 : vector<16x1xf32> to vector<16x32xf32>
    %92 = arith.mulf %87, %91 : vector<16x32xf32>
    %93 = vector.broadcast %73 : vector<1x32xf32> to vector<16x32xf32>
    %94 = arith.mulf %92, %93 : vector<16x32xf32>
    %95 = vector.broadcast %74 : vector<1x32xf32> to vector<16x32xf32>
    %96 = arith.addf %94, %95 : vector<16x32xf32>
    %97 = arith.truncf %96 : vector<16x32xf32> to vector<16x32xbf16>
    %c0_38 = arith.constant 0 : index
    %c0_39 = arith.constant 0 : index
    %98 = vector.load %arg10[%c0_38, %c0_39] : memref<32x128xbf16, #tpu.memory_space<vmem>>, vector<32x128xbf16>
    %cst_40 = arith.constant dense<0.000000e+00> : vector<16x128xf32>
    %99 = tpu.matmul %97, %98, %cst_40 {dimension_numbers = #tpu.dot_dimension_numbers<[1], [0], [0], [1], [0, 0, 1, 1], [], []>} : vector<16x32xbf16>, vector<32x128xbf16>, vector<16x128xf32> -> vector<16x128xf32>
    %c0_41 = arith.constant 0 : index
    %c0_42 = arith.constant 0 : index
    %100 = vector.load %arg11[%c0_41, %c0_42] : memref<1x128xf32, #tpu.memory_space<vmem>>, vector<1x128xf32>
    %101 = vector.broadcast %100 : vector<1x128xf32> to vector<16x128xf32>
    %102 = arith.addf %99, %101 : vector<16x128xf32>
    %cst_43 = arith.constant 0.000000e+00 : f32
    %cst_44 = arith.constant 6.000000e+00 : f32
    %103 = vector.broadcast %cst_43 : f32 to vector<16x128xf32>
    %104 = arith.maximumf %103, %102 : vector<16x128xf32>
    %105 = vector.broadcast %cst_44 : f32 to vector<16x128xf32>
    %106 = arith.minimumf %105, %104 : vector<16x128xf32>
    %107 = arith.truncf %106 : vector<16x128xf32> to vector<16x128xbf16>
    %c0_45 = arith.constant 0 : index
    %c0_46 = arith.constant 0 : index
    %108 = vector.load %arg12[%c0_45, %c0_46] : memref<128x32xbf16, #tpu.memory_space<vmem>>, vector<128x32xbf16>
    %cst_47 = arith.constant dense<0.000000e+00> : vector<16x32xf32>
    %109 = tpu.matmul %107, %108, %cst_47 {dimension_numbers = #tpu.dot_dimension_numbers<[1], [0], [0], [1], [0, 0, 1, 1], [], []>} : vector<16x128xbf16>, vector<128x32xbf16>, vector<16x32xf32> -> vector<16x32xf32>
    %c0_48 = arith.constant 0 : index
    %c0_49 = arith.constant 0 : index
    %110 = vector.load %arg13[%c0_48, %c0_49] : memref<1x32xf32, #tpu.memory_space<vmem>>, vector<1x32xf32>
    %111 = vector.broadcast %110 : vector<1x32xf32> to vector<16x32xf32>
    %112 = arith.addf %109, %111 : vector<16x32xf32>
    %113 = arith.addf %72, %112 : vector<16x32xf32>
    %c0_50 = arith.constant 0 : index
    %c0_51 = arith.constant 0 : index
    %114 = vector.load %arg14[%c0_50, %c0_51] : memref<16x32xf32, #tpu.memory_space<vmem>>, vector<16x32xf32>
    tpu.vector_store %arg14[%c0_50, %c0_51], %113 {strides = array<i32>} : memref<16x32xf32, #tpu.memory_space<vmem>>, vector<16x32xf32>,
    return
  }
  func.func @transform_0(%arg0: i32) -> (i32, i32) {
    %c0_i32 = arith.constant 0 : i32
    %c0_i32_0 = arith.constant 0 : i32
    %c0_i32_1 = arith.constant 0 : i32
    return %c0_i32, %c0_i32_0 : i32, i32
  }
  func.func @transform_1(%arg0: i32) -> (i32, i32) {
    %c0_i32 = arith.constant 0 : i32
    %c0_i32_0 = arith.constant 0 : i32
    %c0_i32_1 = arith.constant 0 : i32
    return %c0_i32, %c0_i32_0 : i32, i32
  }
  func.func @transform_2(%arg0: i32) -> (i32, i32) {
    %c0_i32 = arith.constant 0 : i32
    %c0_i32_0 = arith.constant 0 : i32
    %c0_i32_1 = arith.constant 0 : i32
    return %c0_i32, %c0_i32_0 : i32, i32
  }
  func.func @transform_3(%arg0: i32) -> (i32, i32) {
    %c0_i32 = arith.constant 0 : i32
    %c0_i32_0 = arith.constant 0 : i32
    %c0_i32_1 = arith.constant 0 : i32
    return %c0_i32, %c0_i32_0 : i32, i32
  }
  func.func @transform_4(%arg0: i32) -> (i32, i32) {
    %c0_i32 = arith.constant 0 : i32
    %c0_i32_0 = arith.constant 0 : i32
    %c0_i32_1 = arith.constant 0 : i32
    return %c0_i32, %c0_i32_0 : i32, i32
  }
  func.func @transform_5(%arg0: i32) -> (i32, i32) {
    %c0_i32 = arith.constant 0 : i32
    %c0_i32_0 = arith.constant 0 : i32
    %c0_i32_1 = arith.constant 0 : i32
    return %c0_i32, %c0_i32_0 : i32, i32
  }
  func.func @transform_6(%arg0: i32) -> (i32, i32) {
    %c0_i32 = arith.constant 0 : i32
    %c0_i32_0 = arith.constant 0 : i32
    %c0_i32_1 = arith.constant 0 : i32
    return %c0_i32, %c0_i32_0 : i32, i32
  }
  func.func @transform_7(%arg0: i32) -> (i32, i32) {
    %c0_i32 = arith.constant 0 : i32
    %c0_i32_0 = arith.constant 0 : i32
    %c0_i32_1 = arith.constant 0 : i32
    return %c0_i32, %c0_i32_0 : i32, i32
  }
  func.func @transform_8(%arg0: i32) -> (i32, i32) {
    %c0_i32 = arith.constant 0 : i32
    %c0_i32_0 = arith.constant 0 : i32
    %c0_i32_1 = arith.constant 0 : i32
    return %c0_i32, %c0_i32_0 : i32, i32
  }
  func.func @transform_9(%arg0: i32) -> (i32, i32) {
    %c0_i32 = arith.constant 0 : i32
    %c0_i32_0 = arith.constant 0 : i32
    %c0_i32_1 = arith.constant 0 : i32
    return %c0_i32, %c0_i32_0 : i32, i32
  }
  func.func @transform_10(%arg0: i32) -> (i32, i32) {
    %c0_i32 = arith.constant 0 : i32
    %c0_i32_0 = arith.constant 0 : i32
    %c0_i32_1 = arith.constant 0 : i32
    return %c0_i32, %c0_i32_0 : i32, i32
  }
  func.func @transform_11(%arg0: i32) -> (i32, i32) {
    %c0_i32 = arith.constant 0 : i32
    %c0_i32_0 = arith.constant 0 : i32
    %c0_i32_1 = arith.constant 0 : i32
    return %c0_i32, %c0_i32_0 : i32, i32
  }
  func.func @transform_12(%arg0: i32) -> (i32, i32) {
    %c0_i32 = arith.constant 0 : i32
    %c0_i32_0 = arith.constant 0 : i32
    %c0_i32_1 = arith.constant 0 : i32
    return %c0_i32, %c0_i32_0 : i32, i32
  }
  func.func @transform_13(%arg0: i32) -> (i32, i32) {
    %c0_i32 = arith.constant 0 : i32
    %c0_i32_0 = arith.constant 0 : i32
    %c0_i32_1 = arith.constant 0 : i32
    return %c0_i32, %c0_i32_0 : i32, i32
  }
}

</mosaic_0001>

<llo_original>
// kernel: vit_block.1
$region0: #{vit_block.1}
  #allocation0 [shape = 'u32[]', space=smem, size = 0x4, offset = 0x4, fixed_abs, tag = 'smem constant byte address 0x4 - core index']
  #allocation1 [shape = 'u32[144,128]{1,0:T(1,128)}', space=vmem, size = 0x12000, scoped, tag = 'internal scratch']
  %s0 = inlined_call_operand.vmem [shape: f32[16,32], index: 0, kind: input, shape index: {}]
  %s1 = inlined_call_operand.vmem [shape: f32[64,16], index: 1, kind: input, shape index: {}]
  %s2 = inlined_call_operand.vmem [shape: f32[1,32], index: 2, kind: input, shape index: {}]
  %s3 = inlined_call_operand.vmem [shape: f32[1,32], index: 3, kind: input, shape index: {}]
  %s4 = inlined_call_operand.vmem [shape: bf16[32,96], index: 4, kind: input, shape index: {}]
  %s5 = inlined_call_operand.vmem [shape: bf16[32,32], index: 5, kind: input, shape index: {}]
  %s6 = inlined_call_operand.vmem [shape: f32[1,32], index: 6, kind: input, shape index: {}]
  %s7 = inlined_call_operand.vmem [shape: f32[1,32], index: 7, kind: input, shape index: {}]
  %s8 = inlined_call_operand.vmem [shape: f32[1,32], index: 8, kind: input, shape index: {}]
  %s9 = inlined_call_operand.vmem [shape: bf16[32,128], index: 9, kind: input, shape index: {}]
  %s10 = inlined_call_operand.vmem [shape: f32[1,128], index: 10, kind: input, shape index: {}]
  %s11 = inlined_call_operand.vmem [shape: bf16[128,32], index: 11, kind: input, shape index: {}]
  %s12 = inlined_call_operand.vmem [shape: f32[1,32], index: 12, kind: input, shape index: {}]
  %s13 = inlined_call_operand.hbm [shape: f32[16,32], index: 13, kind: output, shape index: {}]
  %s14 = sld [smem:[#allocation0]]
  $region62: #{vit_block.1} parent=0
    _
  %s16 = ssub.s32 1, %s14
  %s17 = scalar_select 0, %s16, %s14
  $region1: #{vit_block.1} parent=0
    #allocation2 [shape = 'u8[8192]{0}', space=vmem, size = 0x2000, scoped, tag = 'output window, operand 0, single buffered']
    #allocation3 [shape = 's32[1]{0}', space=sflag, size = 0x4, scoped, tag = 'scoped memory for vit_block.1']
    %18 = vsyncpa [#allocation3], 0
    // Predicated region
    $region2: #{vit_block.1} parent=1 // pred_check
      _
    $region3: #{vit_block.1} parent=1 // pred_check_branch
      %20 = sbr.rel (0) target = $region5
    $region4: #{vit_block.1} parent=1 // pred_region
      _
    $region5: #{vit_block.1} parent=1 // pred_fallthru
      _
    // Predicated region
    $region6: #{vit_block.1} parent=1 // pred_check
      _
    $region7: #{vit_block.1} parent=1 // pred_check_branch
      %22 = sbr.rel (0) target = $region9
    $region8: #{vit_block.1} parent=1 // pred_region
      _
    $region9: #{vit_block.1} parent=1 // pred_fallthru
      _
    // Predicated region
    $region10: #{vit_block.1} parent=1 // pred_check
      _
    $region11: #{vit_block.1} parent=1 // pred_check_branch
      %24 = sbr.rel (0) target = $region13
    $region12: #{vit_block.1} parent=1 // pred_region
      _
    $region13: #{vit_block.1} parent=1 // pred_fallthru
      _
    // Predicated region
    $region14: #{vit_block.1} parent=1 // pred_check
      _
    $region15: #{vit_block.1} parent=1 // pred_check_branch
      %26 = sbr.rel (0) target = $region17
    $region16: #{vit_block.1} parent=1 // pred_region
      _
    $region17: #{vit_block.1} parent=1 // pred_fallthru
      _
    // Predicated region
    $region18: #{vit_block.1} parent=1 // pred_check
      _
    $region19: #{vit_block.1} parent=1 // pred_check_branch
      %28 = sbr.rel (0) target = $region21
    $region20: #{vit_block.1} parent=1 // pred_region
      _
    $region21: #{vit_block.1} parent=1 // pred_fallthru
      _
    // Predicated region
    $region22: #{vit_block.1} parent=1 // pred_check
      _
    $region23: #{vit_block.1} parent=1 // pred_check_branch
      %30 = sbr.rel (0) target = $region25
    $region24: #{vit_block.1} parent=1 // pred_region
      _
    $region25: #{vit_block.1} parent=1 // pred_fallthru
      _
    // Predicated region
    $region26: #{vit_block.1} parent=1 // pred_check
      _
    $region27: #{vit_block.1} parent=1 // pred_check_branch
      %32 = sbr.rel (0) target = $region29
    $region28: #{vit_block.1} parent=1 // pred_region
      _
    $region29: #{vit_block.1} parent=1 // pred_fallthru
      _
    // Predicated region
    $region30: #{vit_block.1} parent=1 // pred_check
      _
    $region31: #{vit_block.1} parent=1 // pred_check_branch
      %34 = sbr.rel (0) target = $region33
    $region32: #{vit_block.1} parent=1 // pred_region
      _
    $region33: #{vit_block.1} parent=1 // pred_fallthru
      _
    // Predicated region
    $region34: #{vit_block.1} parent=1 // pred_check
      _
    $region35: #{vit_block.1} parent=1 // pred_check_branch
      %36 = sbr.rel (0) target = $region37
    $region36: #{vit_block.1} parent=1 // pred_region
      _
    $region37: #{vit_block.1} parent=1 // pred_fallthru
      _
    // Predicated region
    $region38: #{vit_block.1} parent=1 // pred_check
      _
    $region39: #{vit_block.1} parent=1 // pred_check_branch
      %38 = sbr.rel (0) target = $region41
    $region40: #{vit_block.1} parent=1 // pred_region
      _
    $region41: #{vit_block.1} parent=1 // pred_fallthru
      _
    // Predicated region
    $region42: #{vit_block.1} parent=1 // pred_check
      _
    $region43: #{vit_block.1} parent=1 // pred_check_branch
      %40 = sbr.rel (0) target = $region45
    $region44: #{vit_block.1} parent=1 // pred_region
      _
    $region45: #{vit_block.1} parent=1 // pred_fallthru
      _
    // Predicated region
    $region46: #{vit_block.1} parent=1 // pred_check
      _
    $region47: #{vit_block.1} parent=1 // pred_check_branch
      %42 = sbr.rel (0) target = $region49
    $region48: #{vit_block.1} parent=1 // pred_region
      _
    $region49: #{vit_block.1} parent=1 // pred_fallthru
      _
    // Predicated region
    $region50: #{vit_block.1} parent=1 // pred_check
      _
    $region51: #{vit_block.1} parent=1 // pred_check_branch
      %44 = sbr.rel (0) target = $region53
    $region52: #{vit_block.1} parent=1 // pred_region
      _
    $region53: #{vit_block.1} parent=1 // pred_fallthru
      _
    %v46 = vld [vmem:[%s0] sm:$0xff]
    %v47 = vld [vmem:[%s0 + $0x8] sm:$0xff]
    %v48 = vld [vmem:[%s2] sm:$0x1]
    %v49 = vld [vmem:[%s3] sm:$0x1]
    %vm50 = vcmask 261120
    %v51 = vsel %vm50, %v46, 0.0
    %52 = vadd.xlane.f32.xlu0 %v51
    %v53 = vpop.xlane.xlu0 %52
    %v54 = vsel %vm50, %v47, 0.0
    %55 = vadd.xlane.f32.xlu0 %v54
    %v56 = vpop.xlane.xlu0 %55
    %v57 = vrcp.pop 32.0
    %v58 = vmul.f32 %v53, %v57
    %v59 = vmul.f32 %v56, %v57
    %v60 = vsub.f32 %v46, %v58
    %v61 = vsub.f32 %v47, %v59
    %v62 = vmul.f32 %v60, %v60
    %v63 = vmul.f32 %v61, %v61
    %v64 = vsel %vm50, %v62, 0.0
    %65 = vadd.xlane.f32.xlu0 %v64
    %v66 = vpop.xlane.xlu0 %65
    %v67 = vsel %vm50, %v63, 0.0
    %68 = vadd.xlane.f32.xlu0 %v67
    %v69 = vpop.xlane.xlu0 %68
    %v70 = vmul.f32 %v66, %v57
    %v71 = vmul.f32 %v69, %v57
    %v72 = vadd.f32 %v70, 1e-05
    %v73 = vadd.f32 %v71, 1e-05
    %v74 = vrsqrt.pop %v72
    %v75 = vrsqrt.pop %v73
    %v76 = vmul.f32 %v60, %v74
    %v77 = vmul.f32 %v61, %v75
    %v79 = vlaneseq
    %v80 = vshrl.u32 %v79, 7
    %v81 = vsub.s32 0, %v80
    %v82 = vrot.slane %v48, %v81
    %v84 = vmul.f32 %v76, %v82
    %v85 = vmul.f32 %v77, %v82
    %v87 = vlaneseq
    %v88 = vshrl.u32 %v87, 7
    %v89 = vsub.s32 0, %v88
    %v90 = vrot.slane %v49, %v89
    %v92 = vadd.f32 %v84, %v90
    %v93 = vadd.f32 %v85, %v90
    %v94 = vpack.c.bf16 %v93, %v92
    %v95 = vld [vmem:[%s4] sm:$0xf]
    %v96 = vld [vmem:[%s4 + $0x4] sm:$0xf]
    %v97 = vld [vmem:[%s4 + $0x8] sm:$0xf]
    %v98 = vld [vmem:[%s4 + $0xc] sm:$0xf]
    %v103 = vunpack.c.l.b16 %v95
    %v104 = vunpack.c.l.b16 %v96
    %v105 = vunpack.c.l.b16 %v97
    %v106 = vunpack.c.l.b16 %v98
    %v107 = vpack.c.b16 %v104, %v103
    %v108 = vpack.c.b16 %v106, %v105
    %v112 = vsel %vm50, %v94, 0
    %114 = vmatprep.subr.bf16.mxu0 0
    %115 = vmatpush1.bf16.msra.mxu0 %v107
    %116 = vmatprep.subr.bf16.mxu0 0
    %117 = vmatpush1.bf16.msra.mxu0 %v108
    %118 = vmatprep.subr.bf16.mxu0 0
    %119 = vmatpush1.bf16.msra.mxu0 0
    %120 = vmatprep.subr.bf16.mxu0 0
    %121 = vmatpush1.bf16.msra.mxu0 0
    %122 = vmatprep.subr.bf16.mxu0 0
    %123 = vmatpush1.bf16.msra.mxu0 0
    %124 = vmatprep.subr.bf16.mxu0 0
    %125 = vmatpush1.bf16.msra.mxu0 0
    %126 = vmatprep.subr.bf16.mxu0 0
    %127 = vmatpush1.bf16.msra.mxu0 0
    %128 = vmatprep.subr.bf16.mxu0 0
    %129 = vmatpush1.bf16.msra.mxu0 0
    %130 = vmatprep.subr.bf16.mxu0 0
    %131 = vmatpush1.bf16.msra.mxu0 0
    %132 = vmatprep.subr.bf16.mxu0 0
    %133 = vmatpush1.bf16.msra.mxu0 0
    %134 = vmatprep.subr.bf16.mxu0 0
    %135 = vmatpush1.bf16.msra.mxu0 0
    %136 = vmatprep.subr.bf16.mxu0 0
    %137 = vmatpush1.bf16.msra.mxu0 0
    %138 = vmatprep.subr.bf16.mxu0 0
    %139 = vmatpush1.bf16.msra.mxu0 0
    %140 = vmatprep.subr.bf16.mxu0 0
    %141 = vmatpush1.bf16.msra.mxu0 0
    %142 = vmatprep.subr.bf16.mxu0 0
    %143 = vmatpush1.bf16.msra.mxu0 0
    %144 = vmatprep.subr.bf16.mxu0 0
    %145 = vmatpush1.bf16.msra.mxu0 0
    %146 = vmatprep.mubr.bf16.mxu0 0
    %147 = vmatmul.mubr.bf16.gmra.mrb[0].mxu0 %v112
    %v148 = vpop.f32.mrb[0].mxu0
    %v149 = vadd.f32 0.0, %v148
    %v150 = vpop.f32.mrb[0].mxu0
    %v151 = vpop.f32.mrb[0].mxu0
    %v152 = vadd.f32 0.0, %v151
    %v153 = vpop.f32.mrb[0].mxu0
    %154 = vdwg.mxu0
    %157 = vrot.lane.b32.xlu0 %v149, 96
    %v158 = vpop.permute.xlu0 %157
    %159 = vrot.lane.b32.xlu0 %v152, 96
    %v160 = vpop.permute.xlu0 %159
    %vm161 = vcmask 64512
    %v162 = vsel %vm161, %v149, 0
    %v164 = vsel %vm161, %v152, 0
    %v166 = vsel %vm161, %v158, 0
    %v168 = vsel %vm161, %v160, 0
    %170 = vmatprep.subr.mxu0 0.0
    %171 = vmatpush1.xpose.msra.mxu0 %v166
    %172 = vmatprep.subr.mxu0 0.0
    %173 = vmatpush1.xpose.msra.mxu0 %v168
    %174 = vmatprep.subr.mxu0 0.0
    %175 = vmatpush1.xpose.msra.mxu0 0.0
    %176 = vmatprep.subr.mxu0 0.0
    %177 = vmatpush1.xpose.msra.mxu0 0.0
    %178 = vmatprep.subr.mxu0 0.0
    %179 = vmatpush1.xpose.msra.mxu0 0.0
    %180 = vmatprep.subr.mxu0 0.0
    %181 = vmatpush1.xpose.msra.mxu0 0.0
    %182 = vmatprep.subr.mxu0 0.0
    %183 = vmatpush1.xpose.msra.mxu0 0.0
    %184 = vmatprep.subr.mxu0 0.0
    %185 = vmatpush1.xpose.msra.mxu0 0.0
    %186 = vmatprep.subr.mxu0 0.0
    %187 = vmatpush1.xpose.msra.mxu0 0.0
    %188 = vmatprep.subr.mxu0 0.0
    %189 = vmatpush1.xpose.msra.mxu0 0.0
    %190 = vmatprep.subr.mxu0 0.0
    %191 = vmatpush1.xpose.msra.mxu0 0.0
    %192 = vmatprep.subr.mxu0 0.0
    %193 = vmatpush1.xpose.msra.mxu0 0.0
    %194 = vmatprep.subr.mxu0 0.0
    %195 = vmatpush1.xpose.msra.mxu0 0.0
    %196 = vmatprep.subr.mxu0 0.0
    %197 = vmatpush1.xpose.msra.mxu0 0.0
    %198 = vmatprep.subr.mxu0 0.0
    %199 = vmatpush1.xpose.msra.mxu0 0.0
    %200 = vmatprep.subr.mxu0 0.0
    %201 = vmatpush1.xpose.msra.mxu0 0.0
    %202 = vmatprep.subr.mxu0 0.0
    %203 = vmatpush1.xpose.msra.mxu0 0.0
    %204 = vmatprep.subr.mxu0 0.0
    %205 = vmatpush1.xpose.msra.mxu0 0.0
    %206 = vmatprep.subr.mxu0 0.0
    %207 = vmatpush1.xpose.msra.mxu0 0.0
    %208 = vmatprep.subr.mxu0 0.0
    %209 = vmatpush1.xpose.msra.mxu0 0.0
    %210 = vmatprep.subr.mxu0 0.0
    %211 = vmatpush1.xpose.msra.mxu0 0.0
    %212 = vmatprep.subr.mxu0 0.0
    %213 = vmatpush1.xpose.msra.mxu0 0.0
    %214 = vmatprep.subr.mxu0 0.0
    %215 = vmatpush1.xpose.msra.mxu0 0.0
    %216 = vmatprep.subr.mxu0 0.0
    %217 = vmatpush1.xpose.msra.mxu0 0.0
    %218 = vmatprep.subr.mxu0 0.0
    %219 = vmatpush1.xpose.msra.mxu0 0.0
    %220 = vmatprep.subr.mxu0 0.0
    %221 = vmatpush1.xpose.msra.mxu0 0.0
    %222 = vmatprep.subr.mxu0 0.0
    %223 = vmatpush1.xpose.msra.mxu0 0.0
    %224 = vmatprep.subr.mxu0 0.0
    %225 = vmatpush1.xpose.msra.mxu0 0.0
    %226 = vmatprep.subr.mxu0 0.0
    %227 = vmatpush1.xpose.msra.mxu0 0.0
    %228 = vmatprep.subr.mxu0 0.0
    %229 = vmatpush1.xpose.msra.mxu0 0.0
    %230 = vmatprep.subr.mxu0 0.0
    %231 = vmatpush1.xpose.msra.mxu0 0.0
    %232 = vmatprep.subr.mxu0 0.0
    %233 = vmatpush1.xpose.msra.mxu0 0.0
    %234 = vmatprep.mubr.f32.mxu0 0.0
    %235 = vmatmul.mubr.f32.gmra.mrb[0].mxu0 %v162
    %v236 = vpop.f32.mrb[0].mxu0
    %v237 = vadd.f32 0.0, %v236
    %v238 = vpop.f32.mrb[0].mxu0
    %239 = vmatprep.mubr.f32.mxu0 0.0
    %240 = vmatmul.mubr.f32.gmra.mrb[0].mxu0 %v164
    %v241 = vpop.f32.mrb[0].mxu0
    %v242 = vadd.f32 0.0, %v241
    %v243 = vpop.f32.mrb[0].mxu0
    %244 = vdwg.mxu0
    %245 = vrot.lane.b32.xlu0 %v149, 120
    %v246 = vpop.permute.xlu0 %245
    %247 = vrot.lane.b32.xlu0 %v152, 120
    %v248 = vpop.permute.xlu0 %247
    %249 = vrot.lane.b32.xlu0 %v149, 88
    %v250 = vpop.permute.xlu0 %249
    %251 = vrot.lane.b32.xlu0 %v152, 88
    %v252 = vpop.permute.xlu0 %251
    %v253 = vsel %vm161, %v246, 0
    %v255 = vsel %vm161, %v248, 0
    %v257 = vsel %vm161, %v250, 0
    %v259 = vsel %vm161, %v252, 0
    %261 = vmatprep.subr.mxu0 0.0
    %262 = vmatpush1.xpose.msra.mxu0 %v257
    %263 = vmatprep.subr.mxu0 0.0
    %264 = vmatpush1.xpose.msra.mxu0 %v259
    %265 = vmatprep.subr.mxu0 0.0
    %266 = vmatpush1.xpose.msra.mxu0 0.0
    %267 = vmatprep.subr.mxu0 0.0
    %268 = vmatpush1.xpose.msra.mxu0 0.0
    %269 = vmatprep.subr.mxu0 0.0
    %270 = vmatpush1.xpose.msra.mxu0 0.0
    %271 = vmatprep.subr.mxu0 0.0
    %272 = vmatpush1.xpose.msra.mxu0 0.0
    %273 = vmatprep.subr.mxu0 0.0
    %274 = vmatpush1.xpose.msra.mxu0 0.0
    %275 = vmatprep.subr.mxu0 0.0
    %276 = vmatpush1.xpose.msra.mxu0 0.0
    %277 = vmatprep.subr.mxu0 0.0
    %278 = vmatpush1.xpose.msra.mxu0 0.0
    %279 = vmatprep.subr.mxu0 0.0
    %280 = vmatpush1.xpose.msra.mxu0 0.0
    %281 = vmatprep.subr.mxu0 0.0
    %282 = vmatpush1.xpose.msra.mxu0 0.0
    %283 = vmatprep.subr.mxu0 0.0
    %284 = vmatpush1.xpose.msra.mxu0 0.0
    %285 = vmatprep.subr.mxu0 0.0
    %286 = vmatpush1.xpose.msra.mxu0 0.0
    %287 = vmatprep.subr.mxu0 0.0
    %288 = vmatpush1.xpose.msra.mxu0 0.0
    %289 = vmatprep.subr.mxu0 0.0
    %290 = vmatpush1.xpose.msra.mxu0 0.0
    %291 = vmatprep.subr.mxu0 0.0
    %292 = vmatpush1.xpose.msra.mxu0 0.0
    %293 = vmatprep.subr.mxu0 0.0
    %294 = vmatpush1.xpose.msra.mxu0 0.0
    %295 = vmatprep.subr.mxu0 0.0
    %296 = vmatpush1.xpose.msra.mxu0 0.0
    %297 = vmatprep.subr.mxu0 0.0
    %298 = vmatpush1.xpose.msra.mxu0 0.0
    %299 = vmatprep.subr.mxu0 0.0
    %300 = vmatpush1.xpose.msra.mxu0 0.0
    %301 = vmatprep.subr.mxu0 0.0
    %302 = vmatpush1.xpose.msra.mxu0 0.0
    %303 = vmatprep.subr.mxu0 0.0
    %304 = vmatpush1.xpose.msra.mxu0 0.0
    %305 = vmatprep.subr.mxu0 0.0
    %306 = vmatpush1.xpose.msra.mxu0 0.0
    %307 = vmatprep.subr.mxu0 0.0
    %308 = vmatpush1.xpose.msra.mxu0 0.0
    %309 = vmatprep.subr.mxu0 0.0
    %310 = vmatpush1.xpose.msra.mxu0 0.0
    %311 = vmatprep.subr.mxu0 0.0
    %312 = vmatpush1.xpose.msra.mxu0 0.0
    %313 = vmatprep.subr.mxu0 0.0
    %314 = vmatpush1.xpose.msra.mxu0 0.0
    %315 = vmatprep.subr.mxu0 0.0
    %316 = vmatpush1.xpose.msra.mxu0 0.0
    %317 = vmatprep.subr.mxu0 0.0
    %318 = vmatpush1.xpose.msra.mxu0 0.0
    %319 = vmatprep.subr.mxu0 0.0
    %320 = vmatpush1.xpose.msra.mxu0 0.0
    %321 = vmatprep.subr.mxu0 0.0
    %322 = vmatpush1.xpose.msra.mxu0 0.0
    %323 = vmatprep.subr.mxu0 0.0
    %324 = vmatpush1.xpose.msra.mxu0 0.0
    %325 = vmatprep.mubr.f32.mxu0 0.0
    %326 = vmatmul.mubr.f32.gmra.mrb[0].mxu0 %v253
    %v327 = vpop.f32.mrb[0].mxu0
    %v328 = vadd.f32 0.0, %v327
    %v329 = vpop.f32.mrb[0].mxu0
    %330 = vmatprep.mubr.f32.mxu0 0.0
    %331 = vmatmul.mubr.f32.gmra.mrb[0].mxu0 %v255
    %v332 = vpop.f32.mrb[0].mxu0
    %v333 = vadd.f32 0.0, %v332
    %v334 = vpop.f32.mrb[0].mxu0
    %335 = vdwg.mxu0
    %336 = vrot.lane.b32.xlu0 %v149, 112
    %v337 = vpop.permute.xlu0 %336
    %338 = vrot.lane.b32.xlu0 %v152, 112
    %v339 = vpop.permute.xlu0 %338
    %340 = vrot.lane.b32.xlu0 %v149, 80
    %v341 = vpop.permute.xlu0 %340
    %342 = vrot.lane.b32.xlu0 %v152, 80
    %v343 = vpop.permute.xlu0 %342
    %v344 = vsel %vm161, %v337, 0
    %v346 = vsel %vm161, %v339, 0
    %v348 = vsel %vm161, %v341, 0
    %v350 = vsel %vm161, %v343, 0
    %352 = vmatprep.subr.mxu0 0.0
    %353 = vmatpush1.xpose.msra.mxu0 %v348
    %354 = vmatprep.subr.mxu0 0.0
    %355 = vmatpush1.xpose.msra.mxu0 %v350
    %356 = vmatprep.subr.mxu0 0.0
    %357 = vmatpush1.xpose.msra.mxu0 0.0
    %358 = vmatprep.subr.mxu0 0.0
    %359 = vmatpush1.xpose.msra.mxu0 0.0
    %360 = vmatprep.subr.mxu0 0.0
    %361 = vmatpush1.xpose.msra.mxu0 0.0
    %362 = vmatprep.subr.mxu0 0.0
    %363 = vmatpush1.xpose.msra.mxu0 0.0
    %364 = vmatprep.subr.mxu0 0.0
    %365 = vmatpush1.xpose.msra.mxu0 0.0
    %366 = vmatprep.subr.mxu0 0.0
    %367 = vmatpush1.xpose.msra.mxu0 0.0
    %368 = vmatprep.subr.mxu0 0.0
    %369 = vmatpush1.xpose.msra.mxu0 0.0
    %370 = vmatprep.subr.mxu0 0.0
    %371 = vmatpush1.xpose.msra.mxu0 0.0
    %372 = vmatprep.subr.mxu0 0.0
    %373 = vmatpush1.xpose.msra.mxu0 0.0
    %374 = vmatprep.subr.mxu0 0.0
    %375 = vmatpush1.xpose.msra.mxu0 0.0
    %376 = vmatprep.subr.mxu0 0.0
    %377 = vmatpush1.xpose.msra.mxu0 0.0
    %378 = vmatprep.subr.mxu0 0.0
    %379 = vmatpush1.xpose.msra.mxu0 0.0
    %380 = vmatprep.subr.mxu0 0.0
    %381 = vmatpush1.xpose.msra.mxu0 0.0
    %382 = vmatprep.subr.mxu0 0.0
    %383 = vmatpush1.xpose.msra.mxu0 0.0
    %384 = vmatprep.subr.mxu0 0.0
    %385 = vmatpush1.xpose.msra.mxu0 0.0
    %386 = vmatprep.subr.mxu0 0.0
    %387 = vmatpush1.xpose.msra.mxu0 0.0
    %388 = vmatprep.subr.mxu0 0.0
    %389 = vmatpush1.xpose.msra.mxu0 0.0
    %390 = vmatprep.subr.mxu0 0.0
    %391 = vmatpush1.xpose.msra.mxu0 0.0
    %392 = vmatprep.subr.mxu0 0.0
    %393 = vmatpush1.xpose.msra.mxu0 0.0
    %394 = vmatprep.subr.mxu0 0.0
    %395 = vmatpush1.xpose.msra.mxu0 0.0
    %396 = vmatprep.subr.mxu0 0.0
    %397 = vmatpush1.xpose.msra.mxu0 0.0
    %398 = vmatprep.subr.mxu0 0.0
    %399 = vmatpush1.xpose.msra.mxu0 0.0
    %400 = vmatprep.subr.mxu0 0.0
    %401 = vmatpush1.xpose.msra.mxu0 0.0
    %402 = vmatprep.subr.mxu0 0.0
    %403 = vmatpush1.xpose.msra.mxu0 0.0
    %404 = vmatprep.subr.mxu0 0.0
    %405 = vmatpush1.xpose.msra.mxu0 0.0
    %406 = vmatprep.subr.mxu0 0.0
    %407 = vmatpush1.xpose.msra.mxu0 0.0
    %408 = vmatprep.subr.mxu0 0.0
    %409 = vmatpush1.xpose.msra.mxu0 0.0
    %410 = vmatprep.subr.mxu0 0.0
    %411 = vmatpush1.xpose.msra.mxu0 0.0
    %412 = vmatprep.subr.mxu0 0.0
    %413 = vmatpush1.xpose.msra.mxu0 0.0
    %414 = vmatprep.subr.mxu0 0.0
    %415 = vmatpush1.xpose.msra.mxu0 0.0
    %416 = vmatprep.mubr.f32.mxu0 0.0
    %417 = vmatmul.mubr.f32.gmra.mrb[0].mxu0 %v344
    %v418 = vpop.f32.mrb[0].mxu0
    %v419 = vadd.f32 0.0, %v418
    %v420 = vpop.f32.mrb[0].mxu0
    %421 = vmatprep.mubr.f32.mxu0 0.0
    %422 = vmatmul.mubr.f32.gmra.mrb[0].mxu0 %v346
    %v423 = vpop.f32.mrb[0].mxu0
    %v424 = vadd.f32 0.0, %v423
    %v425 = vpop.f32.mrb[0].mxu0
    %426 = vdwg.mxu0
    %427 = vrot.lane.b32.xlu0 %v149, 104
    %v428 = vpop.permute.xlu0 %427
    %429 = vrot.lane.b32.xlu0 %v152, 104
    %v430 = vpop.permute.xlu0 %429
    %431 = vrot.lane.b32.xlu0 %v149, 72
    %v432 = vpop.permute.xlu0 %431
    %433 = vrot.lane.b32.xlu0 %v152, 72
    %v434 = vpop.permute.xlu0 %433
    %v435 = vsel %vm161, %v428, 0
    %v437 = vsel %vm161, %v430, 0
    %v439 = vsel %vm161, %v432, 0
    %v441 = vsel %vm161, %v434, 0
    %443 = vmatprep.subr.mxu0 0.0
    %444 = vmatpush1.xpose.msra.mxu0 %v439
    %445 = vmatprep.subr.mxu0 0.0
    %446 = vmatpush1.xpose.msra.mxu0 %v441
    %447 = vmatprep.subr.mxu0 0.0
    %448 = vmatpush1.xpose.msra.mxu0 0.0
    %449 = vmatprep.subr.mxu0 0.0
    %450 = vmatpush1.xpose.msra.mxu0 0.0
    %451 = vmatprep.subr.mxu0 0.0
    %452 = vmatpush1.xpose.msra.mxu0 0.0
    %453 = vmatprep.subr.mxu0 0.0
    %454 = vmatpush1.xpose.msra.mxu0 0.0
    %455 = vmatprep.subr.mxu0 0.0
    %456 = vmatpush1.xpose.msra.mxu0 0.0
    %457 = vmatprep.subr.mxu0 0.0
    %458 = vmatpush1.xpose.msra.mxu0 0.0
    %459 = vmatprep.subr.mxu0 0.0
    %460 = vmatpush1.xpose.msra.mxu0 0.0
    %461 = vmatprep.subr.mxu0 0.0
    %462 = vmatpush1.xpose.msra.mxu0 0.0
    %463 = vmatprep.subr.mxu0 0.0
    %464 = vmatpush1.xpose.msra.mxu0 0.0
    %465 = vmatprep.subr.mxu0 0.0
    %466 = vmatpush1.xpose.msra.mxu0 0.0
    %467 = vmatprep.subr.mxu0 0.0
    %468 = vmatpush1.xpose.msra.mxu0 0.0
    %469 = vmatprep.subr.mxu0 0.0
    %470 = vmatpush1.xpose.msra.mxu0 0.0
    %471 = vmatprep.subr.mxu0 0.0
    %472 = vmatpush1.xpose.msra.mxu0 0.0
    %473 = vmatprep.subr.mxu0 0.0
    %474 = vmatpush1.xpose.msra.mxu0 0.0
    %475 = vmatprep.subr.mxu0 0.0
    %476 = vmatpush1.xpose.msra.mxu0 0.0
    %477 = vmatprep.subr.mxu0 0.0
    %478 = vmatpush1.xpose.msra.mxu0 0.0
    %479 = vmatprep.subr.mxu0 0.0
    %480 = vmatpush1.xpose.msra.mxu0 0.0
    %481 = vmatprep.subr.mxu0 0.0
    %482 = vmatpush1.xpose.msra.mxu0 0.0
    %483 = vmatprep.subr.mxu0 0.0
    %484 = vmatpush1.xpose.msra.mxu0 0.0
    %485 = vmatprep.subr.mxu0 0.0
    %486 = vmatpush1.xpose.msra.mxu0 0.0
    %487 = vmatprep.subr.mxu0 0.0
    %488 = vmatpush1.xpose.msra.mxu0 0.0
    %489 = vmatprep.subr.mxu0 0.0
    %490 = vmatpush1.xpose.msra.mxu0 0.0
    %491 = vmatprep.subr.mxu0 0.0
    %492 = vmatpush1.xpose.msra.mxu0 0.0
    %493 = vmatprep.subr.mxu0 0.0
    %494 = vmatpush1.xpose.msra.mxu0 0.0
    %495 = vmatprep.subr.mxu0 0.0
    %496 = vmatpush1.xpose.msra.mxu0 0.0
    %497 = vmatprep.subr.mxu0 0.0
    %498 = vmatpush1.xpose.msra.mxu0 0.0
    %499 = vmatprep.subr.mxu0 0.0
    %500 = vmatpush1.xpose.msra.mxu0 0.0
    %501 = vmatprep.subr.mxu0 0.0
    %502 = vmatpush1.xpose.msra.mxu0 0.0
    %503 = vmatprep.subr.mxu0 0.0
    %504 = vmatpush1.xpose.msra.mxu0 0.0
    %505 = vmatprep.subr.mxu0 0.0
    %506 = vmatpush1.xpose.msra.mxu0 0.0
    %507 = vmatprep.mubr.f32.mxu0 0.0
    %508 = vmatmul.mubr.f32.gmra.mrb[0].mxu0 %v435
    %v509 = vpop.f32.mrb[0].mxu0
    %v510 = vadd.f32 0.0, %v509
    %v511 = vpop.f32.mrb[0].mxu0
    %512 = vmatprep.mubr.f32.mxu0 0.0
    %513 = vmatmul.mubr.f32.gmra.mrb[0].mxu0 %v437
    %v514 = vpop.f32.mrb[0].mxu0
    %v515 = vadd.f32 0.0, %v514
    %v516 = vpop.f32.mrb[0].mxu0
    %517 = vdwg.mxu0
    %v518 = vld [vmem:[%s1] sm:$0xff]
    %v519 = vld [vmem:[%s1 + $0x8] sm:$0xff]
    %v520 = vld [vmem:[%s1 + $0x10] sm:$0xff]
    %v521 = vld [vmem:[%s1 + $0x18] sm:$0xff]
    %v522 = vld [vmem:[%s1 + $0x20] sm:$0xff]
    %v523 = vld [vmem:[%s1 + $0x28] sm:$0xff]
    %v524 = vld [vmem:[%s1 + $0x30] sm:$0xff]
    %v525 = vld [vmem:[%s1 + $0x38] sm:$0xff]
    %v526 = vadd.f32 %v237, %v518
    %v527 = vadd.f32 %v242, %v519
    %v528 = vadd.f32 %v328, %v520
    %v529 = vadd.f32 %v333, %v521
    %v530 = vadd.f32 %v419, %v522
    %v531 = vadd.f32 %v424, %v523
    %v532 = vadd.f32 %v510, %v524
    %v533 = vadd.f32 %v515, %v525
    %vm534 = vcmask 130048
    %v535 = vsel %vm534, %v526, -inf
    %536 = vmax.xlane.f32.xlu0 %v535
    %v537 = vpop.xlane.xlu0 %536
    %v538 = vsel %vm534, %v527, -inf
    %539 = vmax.xlane.f32.xlu0 %v538
    %v540 = vpop.xlane.xlu0 %539
    %v541 = vsel %vm534, %v528, -inf
    %542 = vmax.xlane.f32.xlu0 %v541
    %v543 = vpop.xlane.xlu0 %542
    %v544 = vsel %vm534, %v529, -inf
    %545 = vmax.xlane.f32.xlu0 %v544
    %v546 = vpop.xlane.xlu0 %545
    %v547 = vsel %vm534, %v530, -inf
    %548 = vmax.xlane.f32.xlu0 %v547
    %v549 = vpop.xlane.xlu0 %548
    %v550 = vsel %vm534, %v531, -inf
    %551 = vmax.xlane.f32.xlu0 %v550
    %v552 = vpop.xlane.xlu0 %551
    %v553 = vsel %vm534, %v532, -inf
    %554 = vmax.xlane.f32.xlu0 %v553
    %v555 = vpop.xlane.xlu0 %554
    %v556 = vsel %vm534, %v533, -inf
    %557 = vmax.xlane.f32.xlu0 %v556
    %v558 = vpop.xlane.xlu0 %557
    %v559 = vsub.f32 %v526, %v537
    %v560 = vsub.f32 %v527, %v540
    %v561 = vsub.f32 %v528, %v543
    %v562 = vsub.f32 %v529, %v546
    %v563 = vsub.f32 %v530, %v549
    %v564 = vsub.f32 %v531, %v552
    %v565 = vsub.f32 %v532, %v555
    %v566 = vsub.f32 %v533, %v558
    %v567 = vmul.f32 %v559, 1.442695
    %v568 = vpow.pop %v567
    %v569 = vmul.f32 %v560, 1.442695
    %v570 = vpow.pop %v569
    %v571 = vmul.f32 %v561, 1.442695
    %v572 = vpow.pop %v571
    %v573 = vmul.f32 %v562, 1.442695
    %v574 = vpow.pop %v573
    %v575 = vmul.f32 %v563, 1.442695
    %v576 = vpow.pop %v575
    %v577 = vmul.f32 %v564, 1.442695
    %v578 = vpow.pop %v577
    %v579 = vmul.f32 %v565, 1.442695
    %v580 = vpow.pop %v579
    %v581 = vmul.f32 %v566, 1.442695
    %v582 = vpow.pop %v581
    %v583 = vsel %vm534, %v568, 0.0
    %584 = vadd.xlane.f32.xlu0 %v583
    %v585 = vpop.xlane.xlu0 %584
    %v586 = vsel %vm534, %v570, 0.0
    %587 = vadd.xlane.f32.xlu0 %v586
    %v588 = vpop.xlane.xlu0 %587
    %v589 = vsel %vm534, %v572, 0.0
    %590 = vadd.xlane.f32.xlu0 %v589
    %v591 = vpop.xlane.xlu0 %590
    %v592 = vsel %vm534, %v574, 0.0
    %593 = vadd.xlane.f32.xlu0 %v592
    %v594 = vpop.xlane.xlu0 %593
    %v595 = vsel %vm534, %v576, 0.0
    %596 = vadd.xlane.f32.xlu0 %v595
    %v597 = vpop.xlane.xlu0 %596
    %v598 = vsel %vm534, %v578, 0.0
    %599 = vadd.xlane.f32.xlu0 %v598
    %v600 = vpop.xlane.xlu0 %599
    %v601 = vsel %vm534, %v580, 0.0
    %602 = vadd.xlane.f32.xlu0 %v601
    %v603 = vpop.xlane.xlu0 %602
    %v604 = vsel %vm534, %v582, 0.0
    %605 = vadd.xlane.f32.xlu0 %v604
    %v606 = vpop.xlane.xlu0 %605
    %v607 = vrcp.pop %v585
    %v608 = vrcp.pop %v588
    %v609 = vrcp.pop %v591
    %v610 = vrcp.pop %v594
    %v611 = vrcp.pop %v597
    %v612 = vrcp.pop %v600
    %v613 = vrcp.pop %v603
    %v614 = vrcp.pop %v606
    %v615 = vmul.f32 %v568, %v607
    %v616 = vmul.f32 %v570, %v608
    %v617 = vmul.f32 %v572, %v609
    %v618 = vmul.f32 %v574, %v610
    %v619 = vmul.f32 %v576, %v611
    %v620 = vmul.f32 %v578, %v612
    %v621 = vmul.f32 %v580, %v613
    %v622 = vmul.f32 %v582, %v614
    %623 = vrot.lane.b32.xlu0 %v149, 64
    %v624 = vpop.permute.xlu0 %623
    %625 = vrot.lane.b32.xlu0 %v152, 64
    %v626 = vpop.permute.xlu0 %625
    %v630 = vsel %vm534, %v615, 0
    %v633 = vsel %vm534, %v616, 0
    %635 = vmatprep.subr.mxu0 0.0
    %636 = vmatpush1.msra.mxu0 %v624
    %637 = vmatprep.subr.mxu0 0.0
    %638 = vmatpush1.msra.mxu0 %v626
    %639 = vmatprep.subr.mxu0 0.0
    %640 = vmatpush1.msra.mxu0 0.0
    %641 = vmatprep.subr.mxu0 0.0
    %642 = vmatpush1.msra.mxu0 0.0
    %643 = vmatprep.subr.mxu0 0.0
    %644 = vmatpush1.msra.mxu0 0.0
    %645 = vmatprep.subr.mxu0 0.0
    %646 = vmatpush1.msra.mxu0 0.0
    %647 = vmatprep.subr.mxu0 0.0
    %648 = vmatpush1.msra.mxu0 0.0
    %649 = vmatprep.subr.mxu0 0.0
    %650 = vmatpush1.msra.mxu0 0.0
    %651 = vmatprep.subr.mxu0 0.0
    %652 = vmatpush1.msra.mxu0 0.0
    %653 = vmatprep.subr.mxu0 0.0
    %654 = vmatpush1.msra.mxu0 0.0
    %655 = vmatprep.subr.mxu0 0.0
    %656 = vmatpush1.msra.mxu0 0.0
    %657 = vmatprep.subr.mxu0 0.0
    %658 = vmatpush1.msra.mxu0 0.0
    %659 = vmatprep.subr.mxu0 0.0
    %660 = vmatpush1.msra.mxu0 0.0
    %661 = vmatprep.subr.mxu0 0.0
    %662 = vmatpush1.msra.mxu0 0.0
    %663 = vmatprep.subr.mxu0 0.0
    %664 = vmatpush1.msra.mxu0 0.0
    %665 = vmatprep.subr.mxu0 0.0
    %666 = vmatpush1.msra.mxu0 0.0
    %667 = vmatprep.subr.mxu0 0.0
    %668 = vmatpush1.msra.mxu0 0.0
    %669 = vmatprep.subr.mxu0 0.0
    %670 = vmatpush1.msra.mxu0 0.0
    %671 = vmatprep.subr.mxu0 0.0
    %672 = vmatpush1.msra.mxu0 0.0
    %673 = vmatprep.subr.mxu0 0.0
    %674 = vmatpush1.msra.mxu0 0.0
    %675 = vmatprep.subr.mxu0 0.0
    %676 = vmatpush1.msra.mxu0 0.0
    %677 = vmatprep.subr.mxu0 0.0
    %678 = vmatpush1.msra.mxu0 0.0
    %679 = vmatprep.subr.mxu0 0.0
    %680 = vmatpush1.msra.mxu0 0.0
    %681 = vmatprep.subr.mxu0 0.0
    %682 = vmatpush1.msra.mxu0 0.0
    %683 = vmatprep.subr.mxu0 0.0
    %684 = vmatpush1.msra.mxu0 0.0
    %685 = vmatprep.subr.mxu0 0.0
    %686 = vmatpush1.msra.mxu0 0.0
    %687 = vmatprep.subr.mxu0 0.0
    %688 = vmatpush1.msra.mxu0 0.0
    %689 = vmatprep.subr.mxu0 0.0
    %690 = vmatpush1.msra.mxu0 0.0
    %691 = vmatprep.subr.mxu0 0.0
    %692 = vmatpush1.msra.mxu0 0.0
    %693 = vmatprep.subr.mxu0 0.0
    %694 = vmatpush1.msra.mxu0 0.0
    %695 = vmatprep.subr.mxu0 0.0
    %696 = vmatpush1.msra.mxu0 0.0
    %697 = vmatprep.subr.mxu0 0.0
    %698 = vmatpush1.msra.mxu0 0.0
    %699 = vmatprep.mubr.f32.mxu0 0.0
    %700 = vmatmul.mubr.f32.gmra.mrb[0].mxu0 %v630
    %v701 = vpop.f32.mrb[0].mxu0
    %v702 = vadd.f32 0.0, %v701
    %v703 = vpop.f32.mrb[0].mxu0
    %704 = vmatprep.mubr.f32.mxu0 0.0
    %705 = vmatmul.mubr.f32.gmra.mrb[0].mxu0 %v633
    %v706 = vpop.f32.mrb[0].mxu0
    %v707 = vadd.f32 0.0, %v706
    %v708 = vpop.f32.mrb[0].mxu0
    %709 = vdwg.mxu0
    %710 = vrot.lane.b32.xlu0 %v149, 56
    %v711 = vpop.permute.xlu0 %710
    %712 = vrot.lane.b32.xlu0 %v152, 56
    %v713 = vpop.permute.xlu0 %712
    %v717 = vsel %vm534, %v617, 0
    %v720 = vsel %vm534, %v618, 0
    %722 = vmatprep.subr.mxu0 0.0
    %723 = vmatpush1.msra.mxu0 %v711
    %724 = vmatprep.subr.mxu0 0.0
    %725 = vmatpush1.msra.mxu0 %v713
    %726 = vmatprep.subr.mxu0 0.0
    %727 = vmatpush1.msra.mxu0 0.0
    %728 = vmatprep.subr.mxu0 0.0
    %729 = vmatpush1.msra.mxu0 0.0
    %730 = vmatprep.subr.mxu0 0.0
    %731 = vmatpush1.msra.mxu0 0.0
    %732 = vmatprep.subr.mxu0 0.0
    %733 = vmatpush1.msra.mxu0 0.0
    %734 = vmatprep.subr.mxu0 0.0
    %735 = vmatpush1.msra.mxu0 0.0
    %736 = vmatprep.subr.mxu0 0.0
    %737 = vmatpush1.msra.mxu0 0.0
    %738 = vmatprep.subr.mxu0 0.0
    %739 = vmatpush1.msra.mxu0 0.0
    %740 = vmatprep.subr.mxu0 0.0
    %741 = vmatpush1.msra.mxu0 0.0
    %742 = vmatprep.subr.mxu0 0.0
    %743 = vmatpush1.msra.mxu0 0.0
    %744 = vmatprep.subr.mxu0 0.0
    %745 = vmatpush1.msra.mxu0 0.0
    %746 = vmatprep.subr.mxu0 0.0
    %747 = vmatpush1.msra.mxu0 0.0
    %748 = vmatprep.subr.mxu0 0.0
    %749 = vmatpush1.msra.mxu0 0.0
    %750 = vmatprep.subr.mxu0 0.0
    %751 = vmatpush1.msra.mxu0 0.0
    %752 = vmatprep.subr.mxu0 0.0
    %753 = vmatpush1.msra.mxu0 0.0
    %754 = vmatprep.subr.mxu0 0.0
    %755 = vmatpush1.msra.mxu0 0.0
    %756 = vmatprep.subr.mxu0 0.0
    %757 = vmatpush1.msra.mxu0 0.0
    %758 = vmatprep.subr.mxu0 0.0
    %759 = vmatpush1.msra.mxu0 0.0
    %760 = vmatprep.subr.mxu0 0.0
    %761 = vmatpush1.msra.mxu0 0.0
    %762 = vmatprep.subr.mxu0 0.0
    %763 = vmatpush1.msra.mxu0 0.0
    %764 = vmatprep.subr.mxu0 0.0
    %765 = vmatpush1.msra.mxu0 0.0
    %766 = vmatprep.subr.mxu0 0.0
    %767 = vmatpush1.msra.mxu0 0.0
    %768 = vmatprep.subr.mxu0 0.0
    %769 = vmatpush1.msra.mxu0 0.0
    %770 = vmatprep.subr.mxu0 0.0
    %771 = vmatpush1.msra.mxu0 0.0
    %772 = vmatprep.subr.mxu0 0.0
    %773 = vmatpush1.msra.mxu0 0.0
    %774 = vmatprep.subr.mxu0 0.0
    %775 = vmatpush1.msra.mxu0 0.0
    %776 = vmatprep.subr.mxu0 0.0
    %777 = vmatpush1.msra.mxu0 0.0
    %778 = vmatprep.subr.mxu0 0.0
    %779 = vmatpush1.msra.mxu0 0.0
    %780 = vmatprep.subr.mxu0 0.0
    %781 = vmatpush1.msra.mxu0 0.0
    %782 = vmatprep.subr.mxu0 0.0
    %783 = vmatpush1.msra.mxu0 0.0
    %784 = vmatprep.subr.mxu0 0.0
    %785 = vmatpush1.msra.mxu0 0.0
    %786 = vmatprep.mubr.f32.mxu0 0.0
    %787 = vmatmul.mubr.f32.gmra.mrb[0].mxu0 %v717
    %v788 = vpop.f32.mrb[0].mxu0
    %v789 = vadd.f32 0.0, %v788
    %v790 = vpop.f32.mrb[0].mxu0
    %791 = vmatprep.mubr.f32.mxu0 0.0
    %792 = vmatmul.mubr.f32.gmra.mrb[0].mxu0 %v720
    %v793 = vpop.f32.mrb[0].mxu0
    %v794 = vadd.f32 0.0, %v793
    %v795 = vpop.f32.mrb[0].mxu0
    %796 = vdwg.mxu0
    %797 = vrot.lane.b32.xlu0 %v149, 48
    %v798 = vpop.permute.xlu0 %797
    %799 = vrot.lane.b32.xlu0 %v152, 48
    %v800 = vpop.permute.xlu0 %799
    %v804 = vsel %vm534, %v619, 0
    %v807 = vsel %vm534, %v620, 0
    %809 = vmatprep.subr.mxu0 0.0
    %810 = vmatpush1.msra.mxu0 %v798
    %811 = vmatprep.subr.mxu0 0.0
    %812 = vmatpush1.msra.mxu0 %v800
    %813 = vmatprep.subr.mxu0 0.0
    %814 = vmatpush1.msra.mxu0 0.0
    %815 = vmatprep.subr.mxu0 0.0
    %816 = vmatpush1.msra.mxu0 0.0
    %817 = vmatprep.subr.mxu0 0.0
    %818 = vmatpush1.msra.mxu0 0.0
    %819 = vmatprep.subr.mxu0 0.0
    %820 = vmatpush1.msra.mxu0 0.0
    %821 = vmatprep.subr.mxu0 0.0
    %822 = vmatpush1.msra.mxu0 0.0
    %823 = vmatprep.subr.mxu0 0.0
    %824 = vmatpush1.msra.mxu0 0.0
    %825 = vmatprep.subr.mxu0 0.0
    %826 = vmatpush1.msra.mxu0 0.0
    %827 = vmatprep.subr.mxu0 0.0
    %828 = vmatpush1.msra.mxu0 0.0
    %829 = vmatprep.subr.mxu0 0.0
    %830 = vmatpush1.msra.mxu0 0.0
    %831 = vmatprep.subr.mxu0 0.0
    %832 = vmatpush1.msra.mxu0 0.0
    %833 = vmatprep.subr.mxu0 0.0
    %834 = vmatpush1.msra.mxu0 0.0
    %835 = vmatprep.subr.mxu0 0.0
    %836 = vmatpush1.msra.mxu0 0.0
    %837 = vmatprep.subr.mxu0 0.0
    %838 = vmatpush1.msra.mxu0 0.0
    %839 = vmatprep.subr.mxu0 0.0
    %840 = vmatpush1.msra.mxu0 0.0
    %841 = vmatprep.subr.mxu0 0.0
    %842 = vmatpush1.msra.mxu0 0.0
    %843 = vmatprep.subr.mxu0 0.0
    %844 = vmatpush1.msra.mxu0 0.0
    %845 = vmatprep.subr.mxu0 0.0
    %846 = vmatpush1.msra.mxu0 0.0
    %847 = vmatprep.subr.mxu0 0.0
    %848 = vmatpush1.msra.mxu0 0.0
    %849 = vmatprep.subr.mxu0 0.0
    %850 = vmatpush1.msra.mxu0 0.0
    %851 = vmatprep.subr.mxu0 0.0
    %852 = vmatpush1.msra.mxu0 0.0
    %853 = vmatprep.subr.mxu0 0.0
    %854 = vmatpush1.msra.mxu0 0.0
    %855 = vmatprep.subr.mxu0 0.0
    %856 = vmatpush1.msra.mxu0 0.0
    %857 = vmatprep.subr.mxu0 0.0
    %858 = vmatpush1.msra.mxu0 0.0
    %859 = vmatprep.subr.mxu0 0.0
    %860 = vmatpush1.msra.mxu0 0.0
    %861 = vmatprep.subr.mxu0 0.0
    %862 = vmatpush1.msra.mxu0 0.0
    %863 = vmatprep.subr.mxu0 0.0
    %864 = vmatpush1.msra.mxu0 0.0
    %865 = vmatprep.subr.mxu0 0.0
    %866 = vmatpush1.msra.mxu0 0.0
    %867 = vmatprep.subr.mxu0 0.0
    %868 = vmatpush1.msra.mxu0 0.0
    %869 = vmatprep.subr.mxu0 0.0
    %870 = vmatpush1.msra.mxu0 0.0
    %871 = vmatprep.subr.mxu0 0.0
    %872 = vmatpush1.msra.mxu0 0.0
    %873 = vmatprep.mubr.f32.mxu0 0.0
    %874 = vmatmul.mubr.f32.gmra.mrb[0].mxu0 %v804
    %v875 = vpop.f32.mrb[0].mxu0
    %v876 = vadd.f32 0.0, %v875
    %v877 = vpop.f32.mrb[0].mxu0
    %878 = vmatprep.mubr.f32.mxu0 0.0
    %879 = vmatmul.mubr.f32.gmra.mrb[0].mxu0 %v807
    %v880 = vpop.f32.mrb[0].mxu0
    %v881 = vadd.f32 0.0, %v880
    %v882 = vpop.f32.mrb[0].mxu0
    %883 = vdwg.mxu0
    %884 = vrot.lane.b32.xlu0 %v149, 40
    %v885 = vpop.permute.xlu0 %884
    %886 = vrot.lane.b32.xlu0 %v152, 40
    %v887 = vpop.permute.xlu0 %886
    %v891 = vsel %vm534, %v621, 0
    %v894 = vsel %vm534, %v622, 0
    %896 = vmatprep.subr.mxu0 0.0
    %897 = vmatpush1.msra.mxu0 %v885
    %898 = vmatprep.subr.mxu0 0.0
    %899 = vmatpush1.msra.mxu0 %v887
    %900 = vmatprep.subr.mxu0 0.0
    %901 = vmatpush1.msra.mxu0 0.0
    %902 = vmatprep.subr.mxu0 0.0
    %903 = vmatpush1.msra.mxu0 0.0
    %904 = vmatprep.subr.mxu0 0.0
    %905 = vmatpush1.msra.mxu0 0.0
    %906 = vmatprep.subr.mxu0 0.0
    %907 = vmatpush1.msra.mxu0 0.0
    %908 = vmatprep.subr.mxu0 0.0
    %909 = vmatpush1.msra.mxu0 0.0
    %910 = vmatprep.subr.mxu0 0.0
    %911 = vmatpush1.msra.mxu0 0.0
    %912 = vmatprep.subr.mxu0 0.0
    %913 = vmatpush1.msra.mxu0 0.0
    %914 = vmatprep.subr.mxu0 0.0
    %915 = vmatpush1.msra.mxu0 0.0
    %916 = vmatprep.subr.mxu0 0.0
    %917 = vmatpush1.msra.mxu0 0.0
    %918 = vmatprep.subr.mxu0 0.0
    %919 = vmatpush1.msra.mxu0 0.0
    %920 = vmatprep.subr.mxu0 0.0
    %921 = vmatpush1.msra.mxu0 0.0
    %922 = vmatprep.subr.mxu0 0.0
    %923 = vmatpush1.msra.mxu0 0.0
    %924 = vmatprep.subr.mxu0 0.0
    %925 = vmatpush1.msra.mxu0 0.0
    %926 = vmatprep.subr.mxu0 0.0
    %927 = vmatpush1.msra.mxu0 0.0
    %928 = vmatprep.subr.mxu0 0.0
    %929 = vmatpush1.msra.mxu0 0.0
    %930 = vmatprep.subr.mxu0 0.0
    %931 = vmatpush1.msra.mxu0 0.0
    %932 = vmatprep.subr.mxu0 0.0
    %933 = vmatpush1.msra.mxu0 0.0
    %934 = vmatprep.subr.mxu0 0.0
    %935 = vmatpush1.msra.mxu0 0.0
    %936 = vmatprep.subr.mxu0 0.0
    %937 = vmatpush1.msra.mxu0 0.0
    %938 = vmatprep.subr.mxu0 0.0
    %939 = vmatpush1.msra.mxu0 0.0
    %940 = vmatprep.subr.mxu0 0.0
    %941 = vmatpush1.msra.mxu0 0.0
    %942 = vmatprep.subr.mxu0 0.0
    %943 = vmatpush1.msra.mxu0 0.0
    %944 = vmatprep.subr.mxu0 0.0
    %945 = vmatpush1.msra.mxu0 0.0
    %946 = vmatprep.subr.mxu0 0.0
    %947 = vmatpush1.msra.mxu0 0.0
    %948 = vmatprep.subr.mxu0 0.0
    %949 = vmatpush1.msra.mxu0 0.0
    %950 = vmatprep.subr.mxu0 0.0
    %951 = vmatpush1.msra.mxu0 0.0
    %952 = vmatprep.subr.mxu0 0.0
    %953 = vmatpush1.msra.mxu0 0.0
    %954 = vmatprep.subr.mxu0 0.0
    %955 = vmatpush1.msra.mxu0 0.0
    %956 = vmatprep.subr.mxu0 0.0
    %957 = vmatpush1.msra.mxu0 0.0
    %958 = vmatprep.subr.mxu0 0.0
    %959 = vmatpush1.msra.mxu0 0.0
    %960 = vmatprep.mubr.f32.mxu0 0.0
    %961 = vmatmul.mubr.f32.gmra.mrb[0].mxu0 %v891
    %v962 = vpop.f32.mrb[0].mxu0
    %v963 = vadd.f32 0.0, %v962
    %v964 = vpop.f32.mrb[0].mxu0
    %965 = vmatprep.mubr.f32.mxu0 0.0
    %966 = vmatmul.mubr.f32.gmra.mrb[0].mxu0 %v894
    %v967 = vpop.f32.mrb[0].mxu0
    %v968 = vadd.f32 0.0, %v967
    %v969 = vpop.f32.mrb[0].mxu0
    %970 = vdwg.mxu0
    %973 = vrot.lane.b32.xlu0 %v789, 8
    %v974 = vpop.permute.xlu0 %973
    %975 = vrot.lane.b32.xlu0 %v794, 8
    %v976 = vpop.permute.xlu0 %975
    %981 = vrot.lane.b32.xlu0 %v876, 16
    %v982 = vpop.permute.xlu0 %981
    %983 = vrot.lane.b32.xlu0 %v881, 16
    %v984 = vpop.permute.xlu0 %983
    %989 = vrot.lane.b32.xlu0 %v963, 24
    %v990 = vpop.permute.xlu0 %989
    %991 = vrot.lane.b32.xlu0 %v968, 24
    %v992 = vpop.permute.xlu0 %991
    %v995 = vsel %vm161, %v702, %v974
    %v996 = vsel %vm161, %v707, %v976
    %v997 = vsel %vm534, %v995, %v982
    %v998 = vsel %vm534, %v996, %v984
    %vm999 = vcmask 195584
    %v1000 = vsel %vm999, %v997, %v990
    %v1001 = vsel %vm999, %v998, %v992
    %v1002 = vpack.c.bf16 %v1001, %v1000
    %v1003 = vld [vmem:[%s5] sm:$0xf]
    %v1004 = vld [vmem:[%s5 + $0x4] sm:$0xf]
    %v1005 = vld [vmem:[%s5 + $0x8] sm:$0xf]
    %v1006 = vld [vmem:[%s5 + $0xc] sm:$0xf]
    %v1007 = vld [vmem:[%s6] sm:$0x1]
    %v1009 = vlaneseq
    %v1010 = vshrl.u32 %v1009, 7
    %v1011 = vsub.s32 0, %v1010
    %v1012 = vrot.slane %v1007, %v1011
    %v1018 = vunpack.c.l.b16 %v1003
    %v1019 = vunpack.c.l.b16 %v1004
    %v1020 = vunpack.c.l.b16 %v1005
    %v1021 = vunpack.c.l.b16 %v1006
    %v1022 = vpack.c.b16 %v1019, %v1018
    %v1023 = vpack.c.b16 %v1021, %v1020
    %v1027 = vsel %vm50, %v1002, 0
    %1029 = vmatprep.subr.bf16.mxu0 0
    %1030 = vmatpush1.bf16.msra.mxu0 %v1022
    %1031 = vmatprep.subr.bf16.mxu0 0
    %1032 = vmatpush1.bf16.msra.mxu0 %v1023
    %1033 = vmatprep.subr.bf16.mxu0 0
    %1034 = vmatpush1.bf16.msra.mxu0 0
    %1035 = vmatprep.subr.bf16.mxu0 0
    %1036 = vmatpush1.bf16.msra.mxu0 0
    %1037 = vmatprep.subr.bf16.mxu0 0
    %1038 = vmatpush1.bf16.msra.mxu0 0
    %1039 = vmatprep.subr.bf16.mxu0 0
    %1040 = vmatpush1.bf16.msra.mxu0 0
    %1041 = vmatprep.subr.bf16.mxu0 0
    %1042 = vmatpush1.bf16.msra.mxu0 0
    %1043 = vmatprep.subr.bf16.mxu0 0
    %1044 = vmatpush1.bf16.msra.mxu0 0
    %1045 = vmatprep.subr.bf16.mxu0 0
    %1046 = vmatpush1.bf16.msra.mxu0 0
    %1047 = vmatprep.subr.bf16.mxu0 0
    %1048 = vmatpush1.bf16.msra.mxu0 0
    %1049 = vmatprep.subr.bf16.mxu0 0
    %1050 = vmatpush1.bf16.msra.mxu0 0
    %1051 = vmatprep.subr.bf16.mxu0 0
    %1052 = vmatpush1.bf16.msra.mxu0 0
    %1053 = vmatprep.subr.bf16.mxu0 0
    %1054 = vmatpush1.bf16.msra.mxu0 0
    %1055 = vmatprep.subr.bf16.mxu0 0
    %1056 = vmatpush1.bf16.msra.mxu0 0
    %1057 = vmatprep.subr.bf16.mxu0 0
    %1058 = vmatpush1.bf16.msra.mxu0 0
    %1059 = vmatprep.subr.bf16.mxu0 0
    %1060 = vmatpush1.bf16.msra.mxu0 0
    %1061 = vmatprep.mubr.bf16.mxu0 0
    %1062 = vmatmul.mubr.bf16.gmra.mrb[0].mxu0 %v1027
    %v1063 = vpop.f32.mrb[0].mxu0
    %v1064 = vadd.f32 %v1012, %v1063
    %v1065 = vpop.f32.mrb[0].mxu0
    %v1066 = vpop.f32.mrb[0].mxu0
    %v1067 = vadd.f32 %v1012, %v1066
    %v1068 = vpop.f32.mrb[0].mxu0
    %1069 = vdwg.mxu0
    %v1070 = vadd.f32 %v46, %v1064
    %v1071 = vadd.f32 %v47, %v1067
    %v1072 = vld [vmem:[%s7] sm:$0x1]
    %v1073 = vld [vmem:[%s8] sm:$0x1]
    %v1074 = vsel %vm50, %v1070, 0.0
    %1075 = vadd.xlane.f32.xlu0 %v1074
    %v1076 = vpop.xlane.xlu0 %1075
    %v1077 = vsel %vm50, %v1071, 0.0
    %1078 = vadd.xlane.f32.xlu0 %v1077
    %v1079 = vpop.xlane.xlu0 %1078
    %v1080 = vmul.f32 %v1076, %v57
    %v1081 = vmul.f32 %v1079, %v57
    %v1082 = vsub.f32 %v1070, %v1080
    %v1083 = vsub.f32 %v1071, %v1081
    %v1084 = vmul.f32 %v1082, %v1082
    %v1085 = vmul.f32 %v1083, %v1083
    %v1086 = vsel %vm50, %v1084, 0.0
    %1087 = vadd.xlane.f32.xlu0 %v1086
    %v1088 = vpop.xlane.xlu0 %1087
    %v1089 = vsel %vm50, %v1085, 0.0
    %1090 = vadd.xlane.f32.xlu0 %v1089
    %v1091 = vpop.xlane.xlu0 %1090
    %v1092 = vmul.f32 %v1088, %v57
    %v1093 = vmul.f32 %v1091, %v57
    %v1094 = vadd.f32 %v1092, 1e-05
    %v1095 = vadd.f32 %v1093, 1e-05
    %v1096 = vrsqrt.pop %v1094
    %v1097 = vrsqrt.pop %v1095
    %v1098 = vmul.f32 %v1082, %v1096
    %v1099 = vmul.f32 %v1083, %v1097
    %v1101 = vlaneseq
    %v1102 = vshrl.u32 %v1101, 7
    %v1103 = vsub.s32 0, %v1102
    %v1104 = vrot.slane %v1072, %v1103
    %v1106 = vmul.f32 %v1098, %v1104
    %v1107 = vmul.f32 %v1099, %v1104
    %v1109 = vlaneseq
    %v1110 = vshrl.u32 %v1109, 7
    %v1111 = vsub.s32 0, %v1110
    %v1112 = vrot.slane %v1073, %v1111
    %v1114 = vadd.f32 %v1106, %v1112
    %v1115 = vadd.f32 %v1107, %v1112
    %v1116 = vpack.c.bf16 %v1115, %v1114
    %v1117 = vld [vmem:[%s9] sm:$0xf]
    %v1118 = vld [vmem:[%s9 + $0x4] sm:$0xf]
    %v1119 = vld [vmem:[%s9 + $0x8] sm:$0xf]
    %v1120 = vld [vmem:[%s9 + $0xc] sm:$0xf]
    %v1121 = vld [vmem:[%s10] sm:$0x1]
    %v1123 = vlaneseq
    %v1124 = vshrl.u32 %v1123, 7
    %v1125 = vsub.s32 0, %v1124
    %v1126 = vrot.slane %v1121, %v1125
    %v1132 = vunpack.c.l.b16 %v1117
    %v1133 = vunpack.c.l.b16 %v1118
    %v1134 = vunpack.c.l.b16 %v1119
    %v1135 = vunpack.c.l.b16 %v1120
    %v1136 = vpack.c.b16 %v1133, %v1132
    %v1137 = vpack.c.b16 %v1135, %v1134
    %v1141 = vsel %vm50, %v1116, 0
    %1143 = vmatprep.subr.bf16.mxu0 0
    %1144 = vmatpush1.bf16.msra.mxu0 %v1136
    %1145 = vmatprep.subr.bf16.mxu0 0
    %1146 = vmatpush1.bf16.msra.mxu0 %v1137
    %1147 = vmatprep.subr.bf16.mxu0 0
    %1148 = vmatpush1.bf16.msra.mxu0 0
    %1149 = vmatprep.subr.bf16.mxu0 0
    %1150 = vmatpush1.bf16.msra.mxu0 0
    %1151 = vmatprep.subr.bf16.mxu0 0
    %1152 = vmatpush1.bf16.msra.mxu0 0
    %1153 = vmatprep.subr.bf16.mxu0 0
    %1154 = vmatpush1.bf16.msra.mxu0 0
    %1155 = vmatprep.subr.bf16.mxu0 0
    %1156 = vmatpush1.bf16.msra.mxu0 0
    %1157 = vmatprep.subr.bf16.mxu0 0
    %1158 = vmatpush1.bf16.msra.mxu0 0
    %1159 = vmatprep.subr.bf16.mxu0 0
    %1160 = vmatpush1.bf16.msra.mxu0 0
    %1161 = vmatprep.subr.bf16.mxu0 0
    %1162 = vmatpush1.bf16.msra.mxu0 0
    %1163 = vmatprep.subr.bf16.mxu0 0
    %1164 = vmatpush1.bf16.msra.mxu0 0
    %1165 = vmatprep.subr.bf16.mxu0 0
    %1166 = vmatpush1.bf16.msra.mxu0 0
    %1167 = vmatprep.subr.bf16.mxu0 0
    %1168 = vmatpush1.bf16.msra.mxu0 0
    %1169 = vmatprep.subr.bf16.mxu0 0
    %1170 = vmatpush1.bf16.msra.mxu0 0
    %1171 = vmatprep.subr.bf16.mxu0 0
    %1172 = vmatpush1.bf16.msra.mxu0 0
    %1173 = vmatprep.subr.bf16.mxu0 0
    %1174 = vmatpush1.bf16.msra.mxu0 0
    %1175 = vmatprep.mubr.bf16.mxu0 0
    %1176 = vmatmul.mubr.bf16.gmra.mrb[0].mxu0 %v1141
    %v1177 = vpop.f32.mrb[0].mxu0
    %v1178 = vadd.f32 %v1126, %v1177
    %v1179 = vpop.f32.mrb[0].mxu0
    %v1180 = vpop.f32.mrb[0].mxu0
    %v1181 = vadd.f32 %v1126, %v1180
    %v1182 = vpop.f32.mrb[0].mxu0
    %1183 = vdwg.mxu0
    %v1184 = vmax.f32 %v1178, 0.0
    %v1185 = vmax.f32 %v1181, 0.0
    %v1186 = vmin.f32 %v1184, 6.0
    %v1187 = vmin.f32 %v1185, 6.0
    %v1188 = vpack.c.bf16 %v1187, %v1186
    %v1189 = vld [vmem:[%s11] sm:$0xf]
    %v1190 = vld [vmem:[%s11 + $0x4] sm:$0xf]
    %v1191 = vld [vmem:[%s11 + $0x8] sm:$0xf]
    %v1192 = vld [vmem:[%s11 + $0xc] sm:$0xf]
    %v1193 = vld [vmem:[%s11 + $0x10] sm:$0xf]
    %v1194 = vld [vmem:[%s11 + $0x14] sm:$0xf]
    %v1195 = vld [vmem:[%s11 + $0x18] sm:$0xf]
    %v1196 = vld [vmem:[%s11 + $0x1c] sm:$0xf]
    %v1197 = vld [vmem:[%s11 + $0x20] sm:$0xf]
    %v1198 = vld [vmem:[%s11 + $0x24] sm:$0xf]
    %v1199 = vld [vmem:[%s11 + $0x28] sm:$0xf]
    %v1200 = vld [vmem:[%s11 + $0x2c] sm:$0xf]
    %v1201 = vld [vmem:[%s11 + $0x30] sm:$0xf]
    %v1202 = vld [vmem:[%s11 + $0x34] sm:$0xf]
    %v1203 = vld [vmem:[%s11 + $0x38] sm:$0xf]
    %v1204 = vld [vmem:[%s11 + $0x3c] sm:$0xf]
    %v1205 = vld [vmem:[%s12] sm:$0x1]
    %v1207 = vlaneseq
    %v1208 = vshrl.u32 %v1207, 7
    %v1209 = vsub.s32 0, %v1208
    %v1210 = vrot.slane %v1205, %v1209
    %v1228 = vunpack.c.l.b16 %v1189
    %v1229 = vunpack.c.l.b16 %v1190
    %v1230 = vunpack.c.l.b16 %v1191
    %v1231 = vunpack.c.l.b16 %v1192
    %v1232 = vunpack.c.l.b16 %v1193
    %v1233 = vunpack.c.l.b16 %v1194
    %v1234 = vunpack.c.l.b16 %v1195
    %v1235 = vunpack.c.l.b16 %v1196
    %v1236 = vunpack.c.l.b16 %v1197
    %v1237 = vunpack.c.l.b16 %v1198
    %v1238 = vunpack.c.l.b16 %v1199
    %v1239 = vunpack.c.l.b16 %v1200
    %v1240 = vunpack.c.l.b16 %v1201
    %v1241 = vunpack.c.l.b16 %v1202
    %v1242 = vunpack.c.l.b16 %v1203
    %v1243 = vunpack.c.l.b16 %v1204
    %v1244 = vpack.c.b16 %v1229, %v1228
    %v1245 = vpack.c.b16 %v1231, %v1230
    %v1246 = vpack.c.b16 %v1233, %v1232
    %v1247 = vpack.c.b16 %v1235, %v1234
    %v1248 = vpack.c.b16 %v1237, %v1236
    %v1249 = vpack.c.b16 %v1239, %v1238
    %v1250 = vpack.c.b16 %v1241, %v1240
    %v1251 = vpack.c.b16 %v1243, %v1242
    %1260 = vmatprep.subr.bf16.mxu0 0
    %1261 = vmatpush1.bf16.msra.mxu0 %v1244
    %1262 = vmatprep.subr.bf16.mxu0 0
    %1263 = vmatpush1.bf16.msra.mxu0 %v1245
    %1264 = vmatprep.subr.bf16.mxu0 0
    %1265 = vmatpush1.bf16.msra.mxu0 %v1246
    %1266 = vmatprep.subr.bf16.mxu0 0
    %1267 = vmatpush1.bf16.msra.mxu0 %v1247
    %1268 = vmatprep.subr.bf16.mxu0 0
    %1269 = vmatpush1.bf16.msra.mxu0 %v1248
    %1270 = vmatprep.subr.bf16.mxu0 0
    %1271 = vmatpush1.bf16.msra.mxu0 %v1249
    %1272 = vmatprep.subr.bf16.mxu0 0
    %1273 = vmatpush1.bf16.msra.mxu0 %v1250
    %1274 = vmatprep.subr.bf16.mxu0 0
    %1275 = vmatpush1.bf16.msra.mxu0 %v1251
    %1276 = vmatprep.subr.bf16.mxu0 0
    %1277 = vmatpush1.bf16.msra.mxu0 0
    %1278 = vmatprep.subr.bf16.mxu0 0
    %1279 = vmatpush1.bf16.msra.mxu0 0
    %1280 = vmatprep.subr.bf16.mxu0 0
    %1281 = vmatpush1.bf16.msra.mxu0 0
    %1282 = vmatprep.subr.bf16.mxu0 0
    %1283 = vmatpush1.bf16.msra.mxu0 0
    %1284 = vmatprep.subr.bf16.mxu0 0
    %1285 = vmatpush1.bf16.msra.mxu0 0
    %1286 = vmatprep.subr.bf16.mxu0 0
    %1287 = vmatpush1.bf16.msra.mxu0 0
    %1288 = vmatprep.subr.bf16.mxu0 0
    %1289 = vmatpush1.bf16.msra.mxu0 0
    %1290 = vmatprep.subr.bf16.mxu0 0
    %1291 = vmatpush1.bf16.msra.mxu0 0
    %1292 = vmatprep.mubr.bf16.mxu0 0
    %1293 = vmatmul.mubr.bf16.gmra.mrb[0].mxu0 %v1188
    %v1294 = vpop.f32.mrb[0].mxu0
    %v1295 = vadd.f32 %v1210, %v1294
    %v1296 = vpop.f32.mrb[0].mxu0
    %v1297 = vpop.f32.mrb[0].mxu0
    %v1298 = vadd.f32 %v1210, %v1297
    %v1299 = vpop.f32.mrb[0].mxu0
    %1300 = vdwg.mxu0
    %v1301 = vadd.f32 %v1070, %v1295
    %v1302 = vadd.f32 %v1071, %v1298
    %1303 = vst.msk [vmem:[#allocation2] sm:$0xff] %vm50, %v1301
    %1304 = vst.msk [vmem:[#allocation2 + $0x8] sm:$0xff] %vm50, %v1302
    // Predicated region
    $region54: #{vit_block.1} parent=1 // pred_check
      _
    $region55: #{vit_block.1} parent=1 // pred_check_branch
      %1306 = sbr.rel (0) target = $region57
    $region56: #{vit_block.1} parent=1 // pred_region
      %s1308 = ssub.s32 256, 256
      %1309 = vsyncadd [#allocation3], %s1308
      %s1310 = sshll.u32 [#allocation2], 4
      %s1311 = int_to_ptr.vmem [resolvable:$true] %s1310
      %1316 = dma.vmem_to_hbm [thread:$0]  %s1311, 256, %s13, [#allocation3], 128, 128, 8
    $region57: #{vit_block.1} parent=1 // pred_fallthru
      _
    // Predicated region
    $region58: #{vit_block.1} parent=1 // pred_check
      _
    $region59: #{vit_block.1} parent=1 // pred_check_branch
      %1318 = sbr.rel (0) target = $region61
    $region60: #{vit_block.1} parent=1 // pred_region
      %1319 = dma.done [#allocation3], 256
    $region61: #{vit_block.1} parent=1 // pred_fallthru
      _
    %1320 = vsyncpa [#allocation3], 1

</llo_original>
